<compile_context>
chip_gen: v6e
topology: v6e:2x2x1
jax: 0.10.0
libtpu: 0.0.40
codegen_flags: <defaults>
</compile_context>

<pallas_src>
import math
import functools

import jax
import jax.numpy as jnp
from jax.experimental import pallas as pl
from jax.experimental.pallas import tpu as pltpu

MAX_LENGTH = 100


# --------------------------------------------------------------------------
# Fused Pallas kernel: grid = (batch_split, layer). One step = one EncoderBlock
# applied to one batch shard, activations carried in VMEM across layers.
# --------------------------------------------------------------------------
def _encoder_stack_kernel(n_heads,
                          x_ref, bias_ref,
                          wqkv_ref, bqkv_ref, wo_ref, bo_ref,
                          g1_ref, be1_ref,
                          w1_ref, b1_ref, w2_ref, b2_ref,
                          g2_ref, be2_ref,
                          o_ref, x_scr):
    Bh, S, F = x_ref.shape
    BS = Bh * S
    Dh = F // n_heads
    cdt = wqkv_ref.dtype                  # matmul operand dtype (bf16 weights)

    l = pl.program_id(1)

    # First layer of this batch shard: load input into the resident VMEM carry.
    @pl.when(l == 0)
    def _():
        x_scr[...] = x_ref[...].reshape(BS, F).astype(jnp.float32)

    x = x_scr[...]                         # (BS, F) f32 residual stream
    bias = bias_ref[...]                   # (Bh, 1, S) additive key-padding mask

    # ---- fused QKV projection (1/sqrt(Dh) already folded into q weights) ----
    qkv = jnp.dot(x.astype(cdt), wqkv_ref[...],
                  preferred_element_type=jnp.float32) + bqkv_ref[...]   # (BS, 3F)
    qkv3 = qkv.reshape(Bh, S, 3 * F)       # single split per layer

    # ---- per-head scores / softmax / context (small static loop) ----
    ctx_heads = []
    for h in range(n_heads):
        q = qkv3[:, :, h * Dh:(h + 1) * Dh]                  # (Bh, S, Dh)
        k = qkv3[:, :, F + h * Dh:F + (h + 1) * Dh]
        v = qkv3[:, :, 2 * F + h * Dh:2 * F + (h + 1) * Dh]
        s = jnp.einsum('bqd,bkd->bqk', q.astype(cdt), k.astype(cdt),
                       preferred_element_type=jnp.float32) + bias       # (Bh, S, S)
        s = s - jnp.max(s, axis=-1, keepdims=True)
        p = jnp.exp(s)
        p = p * pl.reciprocal(jnp.sum(p, axis=-1, keepdims=True), approx=True)
        ctx_heads.append(
            jnp.einsum('bqk,bkd->bqd', p.astype(cdt), v.astype(cdt),
                       preferred_element_type=jnp.float32))             # (Bh, S, Dh)
    ctx = jnp.concatenate(ctx_heads, axis=-1).reshape(BS, F)            # (BS, F)

    # ---- fused output projection ----
    att = jnp.dot(ctx.astype(cdt), wo_ref[...],
                  preferred_element_type=jnp.float32) + bo_ref[...]     # (BS, F)

    # ---- residual + LayerNorm 1 (f32) ----
    y = x + att
    mu = jnp.mean(y, axis=-1, keepdims=True)
    d = y - mu
    var = jnp.mean(d * d, axis=-1, keepdims=True)
    y = d * jax.lax.rsqrt(var + 1e-5) * g1_ref[...] + be1_ref[...]

    # ---- position-wise feed forward: Linear -> (Dropout) -> ReLU -> Linear ----
    h1 = jnp.dot(y.astype(cdt), w1_ref[...],
                 preferred_element_type=jnp.float32) + b1_ref[...]      # (BS, Hid)
    h1 = jnp.maximum(h1, 0.0)
    ff = jnp.dot(h1.astype(cdt), w2_ref[...],
                 preferred_element_type=jnp.float32) + b2_ref[...]      # (BS, F)

    # ---- residual + LayerNorm 2 (f32) ----
    z = y + ff
    mu2 = jnp.mean(z, axis=-1, keepdims=True)
    d2 = z - mu2
    var2 = jnp.mean(d2 * d2, axis=-1, keepdims=True)
    z = d2 * jax.lax.rsqrt(var2 + 1e-5) * g2_ref[...] + be2_ref[...]

    x_scr[...] = z                                # carry to next layer

    # Only write the HBM-bound output block on the final layer.
    @pl.when(l == pl.num_programs(1) - 1)
    def _():
        o_ref[...] = z.reshape(Bh, S, F).astype(o_ref.dtype)


_KPARAM_ORDER = ("wqkv", "bqkv", "wo", "bo", "g1", "be1",
                 "w1", "b1", "w2", "b2", "g2", "be2")


def encoder_stack_pallas(x_bsf, mask_bias, kparams, n_heads, batch_splits=None):
    """x_bsf: (B, S, F) f32. mask_bias: (B, 1, S) f32 additive key-padding mask.
    kparams: kernel-layout weights with a leading layer dim (see prepare_kernel_params)."""
    B, S, F = x_bsf.shape
    L = kparams["wqkv"].shape[0]
    Hid = kparams["w1"].shape[-1]

    if batch_splits is None:
        batch_splits = 2 if (B % 2 == 0 and B >= 2) else 1   # feed 2nd TC on v7x
    Bh = B // batch_splits

    weight_arrays = [kparams[k] for k in _KPARAM_ORDER]

    def stacked_spec(arr):
        # Per-layer block of an (L, ...) stacked weight; layer dim squeezed out.
        nd = arr.ndim
        return pl.BlockSpec((None,) + tuple(arr.shape[1:]),
                            lambda p, l, _nd=nd: (l,) + (0,) * (_nd - 1))

    in_specs = [
        pl.BlockSpec((Bh, S, F), lambda p, l: (p, 0, 0)),   # x: per batch shard
        pl.BlockSpec((Bh, 1, S), lambda p, l: (p, 0, 0)),   # mask bias
    ] + [stacked_spec(w) for w in weight_arrays]

    # Explicit VMEM budget: carry + intermediates + 2x (double-buffered) per-layer weights.
    def nbytes(a):
        return int(a.size) * jnp.dtype(a.dtype).itemsize
    per_layer_w = sum(nbytes(w) for w in weight_arrays) // L
    act_bytes = Bh * S * 4 * (F          # carry
                              + 3 * F    # qkv slab
                              + Hid      # ffn hidden
                              + 6 * F    # misc f32 temporaries
                              + S)       # scores
    io_bytes = 2 * (2 * Bh * S * F * 4 + Bh * S * 4)        # x/out/bias blocks
    vmem_limit = 2 * (2 * per_layer_w + act_bytes + io_bytes)
    vmem_limit = min(max(vmem_limit, 32 * 1024 * 1024), 64 * 1024 * 1024)

    kernel = functools.partial(_encoder_stack_kernel, n_heads)

    out = pl.pallas_call(
        kernel,
        out_shape=jax.ShapeDtypeStruct((B, S, F), jnp.float32),
        grid_spec=pltpu.PrefetchScalarGridSpec(
            num_scalar_prefetch=0,
            grid=(batch_splits, L),
            in_specs=in_specs,
            out_specs=pl.BlockSpec((Bh, S, F), lambda p, l: (p, 0, 0)),
            scratch_shapes=[pltpu.VMEM((Bh * S, F), jnp.float32)],
        ),
        compiler_params=pltpu.CompilerParams(
            dimension_semantics=("parallel", "arbitrary"),  # batch shard || layer carry
            vmem_limit_bytes=int(vmem_limit),
        ),
    )(x_bsf, mask_bias, *weight_arrays)
    return out


# --------------------------------------------------------------------------
# Parameter construction (PyTorch-style layouts) + kernel-layout conversion
# --------------------------------------------------------------------------
def make_params(key, src_vocab_size, n_blocks, n_features, n_heads, n_hidden):
    F, Hid, L = n_features, n_hidden, n_blocks
    ks = jax.random.split(key, 6)

    def rnd(kk, shape, s=0.05):
        return s * jax.random.normal(kk, shape, jnp.float32)

    emb = 0.02 * jax.random.normal(ks[0], (src_vocab_size, F), jnp.float32)
    params = dict(
        in_proj_w=rnd(ks[1], (L, 3 * F, F)),                 # (out, in), q|k|v rows
        in_proj_b=0.01 * jax.random.normal(ks[2], (L, 3 * F), jnp.float32),
        out_proj_w=rnd(ks[3], (L, F, F)),
        out_proj_b=jnp.zeros((L, F), jnp.float32),
        ln1_g=jnp.ones((L, F), jnp.float32),
        ln1_b=jnp.zeros((L, F), jnp.float32),
        ffn_w1=rnd(ks[4], (L, Hid, F)),
        ffn_b1=0.01 * jnp.ones((L, Hid), jnp.float32),
        ffn_w2=rnd(ks[5], (L, F, Hid)),
        ffn_b2=0.01 * jnp.ones((L, F), jnp.float32),
        ln2_g=jnp.ones((L, F), jnp.float32),
        ln2_b=jnp.zeros((L, F), jnp.float32),
    )
    return emb, params


def prepare_kernel_params(params, n_heads, matmul_dtype=jnp.bfloat16):
    """Transpose to kernel layout, fuse QKV, fold 1/sqrt(Dh) into Q, cast matmul
    weights to bf16 for MXU-friendly streaming (biases / LN params stay f32)."""
    L, threeF, F = params["in_proj_w"].shape
    Dh = F // n_heads
    scale = 1.0 / math.sqrt(Dh)

    wqkv = jnp.swapaxes(params["in_proj_w"], 1, 2)            # (L, F, 3F)
    wqkv = wqkv.at[:, :, :F].multiply(scale)                  # fold attention scale
    bqkv = params["in_proj_b"].at[:, :F].multiply(scale).reshape(L, 1, 3 * F)

    return dict(
        wqkv=wqkv.astype(matmul_dtype),
        bqkv=bqkv,
        wo=jnp.swapaxes(params["out_proj_w"], 1, 2).astype(matmul_dtype),
        bo=params["out_proj_b"].reshape(L, 1, F),
        g1=params["ln1_g"].reshape(L, 1, F),
        be1=params["ln1_b"].reshape(L, 1, F),
        w1=jnp.swapaxes(params["ffn_w1"], 1, 2).astype(matmul_dtype),
        b1=params["ffn_b1"].reshape(L, 1, -1),
        w2=jnp.swapaxes(params["ffn_w2"], 1, 2).astype(matmul_dtype),
        b2=params["ffn_b2"].reshape(L, 1, F),
        g2=params["ln2_g"].reshape(L, 1, F),
        be2=params["ln2_b"].reshape(L, 1, F),
    )


def positional_encoding_table(d_model, max_len):
    position = jnp.arange(max_len, dtype=jnp.float32)[:, None]
    div_term = jnp.exp(jnp.arange(0, d_model, 2, dtype=jnp.float32)
                       * (-math.log(10000.0) / d_model))
    pe = jnp.zeros((max_len, d_model), jnp.float32)
    pe = pe.at[:, 0::2].set(jnp.sin(position * div_term))
    pe = pe.at[:, 1::2].set(jnp.cos(position * div_term))
    return pe                                                  # (max_len, d_model)


# --------------------------------------------------------------------------
# Full Encoder forward (embedding + PE + fused encoder-stack kernel)
# --------------------------------------------------------------------------
def encoder_forward(ids_sb, mask_bs, emb_table, pe_table, kparams, n_heads):
    """ids_sb: (S, B) int32; mask_bs: (B, S) bool (True = ignore).
    Returns (S, B, F) float32, matching the PyTorch module."""
    S, B = ids_sb.shape
    x = jnp.take(emb_table, ids_sb, axis=0)                    # (S, B, F)
    x = x + pe_table[:S][:, None, :]
    x = jnp.transpose(x, (1, 0, 2))                            # (B, S, F)
    mask_bias = jnp.where(mask_bs, -1e9, 0.0).astype(jnp.float32)[:, None, :]
    y = encoder_stack_pallas(x, mask_bias, kparams, n_heads)   # (B, S, F)
    return jnp.transpose(y, (1, 0, 2))                         # (S, B, F)


# --------------------------------------------------------------------------
# Pure-JAX f32 reference (PyTorch-layout weights) for a correctness check
# --------------------------------------------------------------------------
def _encoder_reference(ids_sb, mask_bs, emb_table, pe_table, params, n_heads):
    S, B = ids_sb.shape
    F = emb_table.shape[1]
    H = n_heads
    Dh = F // H
    x = jnp.take(emb_table, ids_sb, axis=0) + pe_table[:S][:, None, :]
    x = jnp.transpose(x, (1, 0, 2))                            # (B, S, F)
    bias = jnp.where(mask_bs, -1e9, 0.0).astype(jnp.float32)
    L = params["in_proj_w"].shape[0]
    for l in range(L):
        qkv = x @ params["in_proj_w"][l].T + params["in_proj_b"][l]
        q, k, v = jnp.split(qkv, 3, axis=-1)

        def heads(t):
            return jnp.transpose(t.reshape(B, S, H, Dh), (0, 2, 1, 3))
        q, k, v = heads(q) / math.sqrt(Dh), heads(k), heads(v)
        s = jnp.einsum('bhqd,bhkd->bhqk', q, k) + bias[:, None, None, :]
        p = jax.nn.softmax(s, axis=-1)
        ctx = jnp.einsum('bhqk,bhkd->bhqd', p, v)
        ctx = jnp.transpose(ctx, (0, 2, 1, 3)).reshape(B, S, F)
        att = ctx @ params["out_proj_w"][l].T + params["out_proj_b"][l]
        y = x + att
        mu = y.mean(-1, keepdims=True)
        var = ((y - mu) ** 2).mean(-1, keepdims=True)
        y = (y - mu) * jax.lax.rsqrt(var + 1e-5) * params["ln1_g"][l] + params["ln1_b"][l]
        h1 = jnp.maximum(y @ params["ffn_w1"][l].T + params["ffn_b1"][l], 0.0)
        ff = h1 @ params["ffn_w2"][l].T + params["ffn_b2"][l]
        z = y + ff
        mu2 = z.mean(-1, keepdims=True)
        var2 = ((z - mu2) ** 2).mean(-1, keepdims=True)
        x = (z - mu2) * jax.lax.rsqrt(var2 + 1e-5) * params["ln2_g"][l] + params["ln2_b"][l]
    return jnp.transpose(x, (1, 0, 2))                         # (S, B, F)


# --------------------------------------------------------------------------
if __name__ == "__main__":
    # small config consistent with the module
    src_vocab_size = 50
    n_blocks = 2
    n_features = 32
    n_heads = 4
    n_hidden = 64
    S, B = 8, 2

    key = jax.random.PRNGKey(0)
    k_ids, k_params = jax.random.split(key)

    emb_table, params = make_params(k_params, src_vocab_size, n_blocks,
                                    n_features, n_heads, n_hidden)
    kparams = prepare_kernel_params(params, n_heads)           # fused / bf16 / pre-scaled
    pe_table = positional_encoding_table(n_features, MAX_LENGTH)

    ids = jax.random.randint(k_ids, (S, B), 0, src_vocab_size, dtype=jnp.int32)
    # key-padding mask: True = position ignored (batch 0 full length, batch 1 len 6)
    lengths = jnp.array([8, 6], dtype=jnp.int32)
    mask = jnp.arange(S)[None, :] >= lengths[:, None]          # (B, S) bool

    fwd = jax.jit(encoder_forward, static_argnums=(5,))
    out = fwd(ids, mask, emb_table, pe_table, kparams, n_heads)
    out = jax.block_until_ready(out)

    assert out.shape == (S, B, n_features), out.shape
    assert bool(jnp.all(jnp.isfinite(out)))

    ref = _encoder_reference(ids, mask, emb_table, pe_table, params, n_heads)
    max_err = float(jnp.max(jnp.abs(out - ref)))
    # bf16 matmul operands (f32 accumulation) vs pure-f32 reference: small drift expected.
    assert max_err < 3e-2, f"max abs err vs reference: {max_err}"

    print("KERNEL_OK")
</pallas_src>

<mosaic_0001>
module attributes {stable_mosaic.version = 11 : i64} {
  func.func @_encoder_stack_kernel(%arg0: i32, %arg1: i32, %arg2: memref<1x8x32xf32, #tpu.memory_space<vmem>>, %arg3: memref<1x1x8xf32, #tpu.memory_space<vmem>>, %arg4: memref<1x32x96xbf16, #tpu.memory_space<vmem>>, %arg5: memref<1x1x96xf32, #tpu.memory_space<vmem>>, %arg6: memref<1x32x32xbf16, #tpu.memory_space<vmem>>, %arg7: memref<1x1x32xf32, #tpu.memory_space<vmem>>, %arg8: memref<1x1x32xf32, #tpu.memory_space<vmem>>, %arg9: memref<1x1x32xf32, #tpu.memory_space<vmem>>, %arg10: memref<1x32x64xbf16, #tpu.memory_space<vmem>>, %arg11: memref<1x1x64xf32, #tpu.memory_space<vmem>>, %arg12: memref<1x64x32xbf16, #tpu.memory_space<vmem>>, %arg13: memref<1x1x32xf32, #tpu.memory_space<vmem>>, %arg14: memref<1x1x32xf32, #tpu.memory_space<vmem>>, %arg15: memref<1x1x32xf32, #tpu.memory_space<vmem>>, %arg16: memref<1x8x32xf32, #tpu.memory_space<vmem>>, %arg17: memref<8x32xf32, #tpu.memory_space<vmem>>) attributes {dimension_semantics = [#tpu.dimension_semantics<parallel>, #tpu.dimension_semantics<arbitrary>], iteration_bounds = array<i64: 2, 2>, scalar_prefetch = 0 : i64, scratch_operands = 1 : i64, tpu.core_type = #tpu.core_type<tc>, window_params = [{transform_indices = @transform_0, window_bounds = array<i64: 1, 8, 32>}, {transform_indices = @transform_1, window_bounds = array<i64: 1, 1, 8>}, {transform_indices = @transform_2, window_bounds = array<i64: 1, 32, 96>}, {transform_indices = @transform_3, window_bounds = array<i64: 1, 1, 96>}, {transform_indices = @transform_4, window_bounds = array<i64: 1, 32, 32>}, {transform_indices = @transform_5, window_bounds = array<i64: 1, 1, 32>}, {transform_indices = @transform_6, window_bounds = array<i64: 1, 1, 32>}, {transform_indices = @transform_7, window_bounds = array<i64: 1, 1, 32>}, {transform_indices = @transform_8, window_bounds = array<i64: 1, 32, 64>}, {transform_indices = @transform_9, window_bounds = array<i64: 1, 1, 64>}, {transform_indices = @transform_10, window_bounds = array<i64: 1, 64, 32>}, {transform_indices = @transform_11, window_bounds = array<i64: 1, 1, 32>}, {transform_indices = @transform_12, window_bounds = array<i64: 1, 1, 32>}, {transform_indices = @transform_13, window_bounds = array<i64: 1, 1, 32>}, {transform_indices = @transform_14, window_bounds = array<i64: 1, 8, 32>}]} {
    %c0_i32 = arith.constant 0 : i32
    %0 = arith.cmpi eq, %arg1, %c0_i32 : i32
    %1 = arith.extui %0 : i1 to i32
    %c0_i32_0 = arith.constant 0 : i32
    %2 = arith.cmpi ne, %1, %c0_i32_0 : i32
    scf.if %2 {
      %c0_74 = arith.constant 0 : index
      %c0_75 = arith.constant 0 : index
      %c0_76 = arith.constant 0 : index
      %180 = vector.load %arg2[%c0_74, %c0_75, %c0_76] : memref<1x8x32xf32, #tpu.memory_space<vmem>>, vector<1x8x32xf32>
      %181 = vector.shape_cast %180 : vector<1x8x32xf32> to vector<8x32xf32>
      %c0_77 = arith.constant 0 : index
      %c0_78 = arith.constant 0 : index
      %182 = vector.load %arg17[%c0_77, %c0_78] : memref<8x32xf32, #tpu.memory_space<vmem>>, vector<8x32xf32>
      tpu.vector_store %arg17[%c0_77, %c0_78], %181 {strides = array<i32>} : memref<8x32xf32, #tpu.memory_space<vmem>>, vector<8x32xf32>,
    } else {
    }
    %c0 = arith.constant 0 : index
    %c0_1 = arith.constant 0 : index
    %3 = vector.load %arg17[%c0, %c0_1] : memref<8x32xf32, #tpu.memory_space<vmem>>, vector<8x32xf32>
    %c0_2 = arith.constant 0 : index
    %c0_3 = arith.constant 0 : index
    %c0_4 = arith.constant 0 : index
    %4 = vector.load %arg3[%c0_2, %c0_3, %c0_4] : memref<1x1x8xf32, #tpu.memory_space<vmem>>, vector<1x1x8xf32>
    %5 = arith.truncf %3 : vector<8x32xf32> to vector<8x32xbf16>
    %c0_5 = arith.constant 0 : index
    %c0_6 = arith.constant 0 : index
    %c0_7 = arith.constant 0 : index
    %6 = vector.load %arg4[%c0_5, %c0_6, %c0_7] : memref<1x32x96xbf16, #tpu.memory_space<vmem>>, vector<1x32x96xbf16>
    %7 = vector.shape_cast %6 : vector<1x32x96xbf16> to vector<32x96xbf16>
    %cst = arith.constant dense<0.000000e+00> : vector<8x96xf32>
    %8 = tpu.matmul %5, %7, %cst {dimension_numbers = #tpu.dot_dimension_numbers<[1], [0], [0], [1], [0, 0, 1, 1], [], []>} : vector<8x32xbf16>, vector<32x96xbf16>, vector<8x96xf32> -> vector<8x96xf32>
    %c0_8 = arith.constant 0 : index
    %c0_9 = arith.constant 0 : index
    %c0_10 = arith.constant 0 : index
    %9 = vector.load %arg5[%c0_8, %c0_9, %c0_10] : memref<1x1x96xf32, #tpu.memory_space<vmem>>, vector<1x1x96xf32>
    %10 = vector.shape_cast %9 : vector<1x1x96xf32> to vector<1x96xf32>
    %11 = vector.broadcast %10 : vector<1x96xf32> to vector<8x96xf32>
    %12 = arith.addf %8, %11 : vector<8x96xf32>
    %13 = vector.shape_cast %12 : vector<8x96xf32> to vector<1x8x96xf32>
    %14 = vector.extract_strided_slice %13 {offsets = [0, 0, 0], sizes = [1, 8, 8], strides = [1, 1, 1]} : vector<1x8x96xf32> to vector<1x8x8xf32>
    %15 = vector.extract_strided_slice %13 {offsets = [0, 0, 32], sizes = [1, 8, 8], strides = [1, 1, 1]} : vector<1x8x96xf32> to vector<1x8x8xf32>
    %16 = vector.extract_strided_slice %13 {offsets = [0, 0, 64], sizes = [1, 8, 8], strides = [1, 1, 1]} : vector<1x8x96xf32> to vector<1x8x8xf32>
    %17 = arith.truncf %14 : vector<1x8x8xf32> to vector<1x8x8xbf16>
    %18 = arith.truncf %15 : vector<1x8x8xf32> to vector<1x8x8xbf16>
    "tpu.trace_start"() <{level = 10 : i32, message = "bqd,bkd->bqk"}> : () -> ()
    %cst_11 = arith.constant dense<0.000000e+00> : vector<1x8x8xf32>
    %19 = tpu.matmul %17, %18, %cst_11 {dimension_numbers = #tpu.dot_dimension_numbers<[2], [2], [1], [1], [0, 0, 0, 1, 1, 1], [0], [0]>} : vector<1x8x8xbf16>, vector<1x8x8xbf16>, vector<1x8x8xf32> -> vector<1x8x8xf32>
    "tpu.trace_stop"() : () -> ()
    %20 = vector.broadcast %4 : vector<1x1x8xf32> to vector<1x8x8xf32>
    %21 = arith.addf %19, %20 : vector<1x8x8xf32>
    %cst_12 = arith.constant dense<0xFF800000> : vector<1x8xf32>
    %22 = vector.multi_reduction <maximumf>, %21, %cst_12 [2] : vector<1x8x8xf32> to vector<1x8xf32>
    %23 = vector.shape_cast %22 : vector<1x8xf32> to vector<1x8x1xf32>
    %24 = vector.broadcast %23 : vector<1x8x1xf32> to vector<1x8x8xf32>
    %25 = arith.subf %21, %24 : vector<1x8x8xf32>
    %26 = math.exp %25 : vector<1x8x8xf32>
    %cst_13 = arith.constant dense<0.000000e+00> : vector<1x8xf32>
    %27 = vector.multi_reduction <add>, %26, %cst_13 [2] : vector<1x8x8xf32> to vector<1x8xf32>
    %28 = vector.shape_cast %27 : vector<1x8xf32> to vector<1x8x1xf32>
    %29 = tpu.reciprocal %28 {approx = true} : vector<1x8x1xf32> -> vector<1x8x1xf32>
    %30 = vector.broadcast %29 : vector<1x8x1xf32> to vector<1x8x8xf32>
    %31 = arith.mulf %26, %30 : vector<1x8x8xf32>
    %32 = arith.truncf %31 : vector<1x8x8xf32> to vector<1x8x8xbf16>
    %33 = arith.truncf %16 : vector<1x8x8xf32> to vector<1x8x8xbf16>
    "tpu.trace_start"() <{level = 10 : i32, message = "bqk,bkd->bqd"}> : () -> ()
    %cst_14 = arith.constant dense<0.000000e+00> : vector<1x8x8xf32>
    %34 = tpu.matmul %32, %33, %cst_14 {dimension_numbers = #tpu.dot_dimension_numbers<[2], [1], [1], [2], [0, 0, 0, 1, 1, 2], [0], [0]>} : vector<1x8x8xbf16>, vector<1x8x8xbf16>, vector<1x8x8xf32> -> vector<1x8x8xf32>
    "tpu.trace_stop"() : () -> ()
    %35 = vector.extract_strided_slice %13 {offsets = [0, 0, 8], sizes = [1, 8, 8], strides = [1, 1, 1]} : vector<1x8x96xf32> to vector<1x8x8xf32>
    %36 = vector.extract_strided_slice %13 {offsets = [0, 0, 40], sizes = [1, 8, 8], strides = [1, 1, 1]} : vector<1x8x96xf32> to vector<1x8x8xf32>
    %37 = vector.extract_strided_slice %13 {offsets = [0, 0, 72], sizes = [1, 8, 8], strides = [1, 1, 1]} : vector<1x8x96xf32> to vector<1x8x8xf32>
    %38 = arith.truncf %35 : vector<1x8x8xf32> to vector<1x8x8xbf16>
    %39 = arith.truncf %36 : vector<1x8x8xf32> to vector<1x8x8xbf16>
    "tpu.trace_start"() <{level = 10 : i32, message = "bqd,bkd->bqk"}> : () -> ()
    %cst_15 = arith.constant dense<0.000000e+00> : vector<1x8x8xf32>
    %40 = tpu.matmul %38, %39, %cst_15 {dimension_numbers = #tpu.dot_dimension_numbers<[2], [2], [1], [1], [0, 0, 0, 1, 1, 1], [0], [0]>} : vector<1x8x8xbf16>, vector<1x8x8xbf16>, vector<1x8x8xf32> -> vector<1x8x8xf32>
    "tpu.trace_stop"() : () -> ()
    %41 = vector.broadcast %4 : vector<1x1x8xf32> to vector<1x8x8xf32>
    %42 = arith.addf %40, %41 : vector<1x8x8xf32>
    %cst_16 = arith.constant dense<0xFF800000> : vector<1x8xf32>
    %43 = vector.multi_reduction <maximumf>, %42, %cst_16 [2] : vector<1x8x8xf32> to vector<1x8xf32>
    %44 = vector.shape_cast %43 : vector<1x8xf32> to vector<1x8x1xf32>
    %45 = vector.broadcast %44 : vector<1x8x1xf32> to vector<1x8x8xf32>
    %46 = arith.subf %42, %45 : vector<1x8x8xf32>
    %47 = math.exp %46 : vector<1x8x8xf32>
    %cst_17 = arith.constant dense<0.000000e+00> : vector<1x8xf32>
    %48 = vector.multi_reduction <add>, %47, %cst_17 [2] : vector<1x8x8xf32> to vector<1x8xf32>
    %49 = vector.shape_cast %48 : vector<1x8xf32> to vector<1x8x1xf32>
    %50 = tpu.reciprocal %49 {approx = true} : vector<1x8x1xf32> -> vector<1x8x1xf32>
    %51 = vector.broadcast %50 : vector<1x8x1xf32> to vector<1x8x8xf32>
    %52 = arith.mulf %47, %51 : vector<1x8x8xf32>
    %53 = arith.truncf %52 : vector<1x8x8xf32> to vector<1x8x8xbf16>
    %54 = arith.truncf %37 : vector<1x8x8xf32> to vector<1x8x8xbf16>
    "tpu.trace_start"() <{level = 10 : i32, message = "bqk,bkd->bqd"}> : () -> ()
    %cst_18 = arith.constant dense<0.000000e+00> : vector<1x8x8xf32>
    %55 = tpu.matmul %53, %54, %cst_18 {dimension_numbers = #tpu.dot_dimension_numbers<[2], [1], [1], [2], [0, 0, 0, 1, 1, 2], [0], [0]>} : vector<1x8x8xbf16>, vector<1x8x8xbf16>, vector<1x8x8xf32> -> vector<1x8x8xf32>
    "tpu.trace_stop"() : () -> ()
    %56 = vector.extract_strided_slice %13 {offsets = [0, 0, 16], sizes = [1, 8, 8], strides = [1, 1, 1]} : vector<1x8x96xf32> to vector<1x8x8xf32>
    %57 = vector.extract_strided_slice %13 {offsets = [0, 0, 48], sizes = [1, 8, 8], strides = [1, 1, 1]} : vector<1x8x96xf32> to vector<1x8x8xf32>
    %58 = vector.extract_strided_slice %13 {offsets = [0, 0, 80], sizes = [1, 8, 8], strides = [1, 1, 1]} : vector<1x8x96xf32> to vector<1x8x8xf32>
    %59 = arith.truncf %56 : vector<1x8x8xf32> to vector<1x8x8xbf16>
    %60 = arith.truncf %57 : vector<1x8x8xf32> to vector<1x8x8xbf16>
    "tpu.trace_start"() <{level = 10 : i32, message = "bqd,bkd->bqk"}> : () -> ()
    %cst_19 = arith.constant dense<0.000000e+00> : vector<1x8x8xf32>
    %61 = tpu.matmul %59, %60, %cst_19 {dimension_numbers = #tpu.dot_dimension_numbers<[2], [2], [1], [1], [0, 0, 0, 1, 1, 1], [0], [0]>} : vector<1x8x8xbf16>, vector<1x8x8xbf16>, vector<1x8x8xf32> -> vector<1x8x8xf32>
    "tpu.trace_stop"() : () -> ()
    %62 = vector.broadcast %4 : vector<1x1x8xf32> to vector<1x8x8xf32>
    %63 = arith.addf %61, %62 : vector<1x8x8xf32>
    %cst_20 = arith.constant dense<0xFF800000> : vector<1x8xf32>
    %64 = vector.multi_reduction <maximumf>, %63, %cst_20 [2] : vector<1x8x8xf32> to vector<1x8xf32>
    %65 = vector.shape_cast %64 : vector<1x8xf32> to vector<1x8x1xf32>
    %66 = vector.broadcast %65 : vector<1x8x1xf32> to vector<1x8x8xf32>
    %67 = arith.subf %63, %66 : vector<1x8x8xf32>
    %68 = math.exp %67 : vector<1x8x8xf32>
    %cst_21 = arith.constant dense<0.000000e+00> : vector<1x8xf32>
    %69 = vector.multi_reduction <add>, %68, %cst_21 [2] : vector<1x8x8xf32> to vector<1x8xf32>
    %70 = vector.shape_cast %69 : vector<1x8xf32> to vector<1x8x1xf32>
    %71 = tpu.reciprocal %70 {approx = true} : vector<1x8x1xf32> -> vector<1x8x1xf32>
    %72 = vector.broadcast %71 : vector<1x8x1xf32> to vector<1x8x8xf32>
    %73 = arith.mulf %68, %72 : vector<1x8x8xf32>
    %74 = arith.truncf %73 : vector<1x8x8xf32> to vector<1x8x8xbf16>
    %75 = arith.truncf %58 : vector<1x8x8xf32> to vector<1x8x8xbf16>
    "tpu.trace_start"() <{level = 10 : i32, message = "bqk,bkd->bqd"}> : () -> ()
    %cst_22 = arith.constant dense<0.000000e+00> : vector<1x8x8xf32>
    %76 = tpu.matmul %74, %75, %cst_22 {dimension_numbers = #tpu.dot_dimension_numbers<[2], [1], [1], [2], [0, 0, 0, 1, 1, 2], [0], [0]>} : vector<1x8x8xbf16>, vector<1x8x8xbf16>, vector<1x8x8xf32> -> vector<1x8x8xf32>
    "tpu.trace_stop"() : () -> ()
    %77 = vector.extract_strided_slice %13 {offsets = [0, 0, 24], sizes = [1, 8, 8], strides = [1, 1, 1]} : vector<1x8x96xf32> to vector<1x8x8xf32>
    %78 = vector.extract_strided_slice %13 {offsets = [0, 0, 56], sizes = [1, 8, 8], strides = [1, 1, 1]} : vector<1x8x96xf32> to vector<1x8x8xf32>
    %79 = vector.extract_strided_slice %13 {offsets = [0, 0, 88], sizes = [1, 8, 8], strides = [1, 1, 1]} : vector<1x8x96xf32> to vector<1x8x8xf32>
    %80 = arith.truncf %77 : vector<1x8x8xf32> to vector<1x8x8xbf16>
    %81 = arith.truncf %78 : vector<1x8x8xf32> to vector<1x8x8xbf16>
    "tpu.trace_start"() <{level = 10 : i32, message = "bqd,bkd->bqk"}> : () -> ()
    %cst_23 = arith.constant dense<0.000000e+00> : vector<1x8x8xf32>
    %82 = tpu.matmul %80, %81, %cst_23 {dimension_numbers = #tpu.dot_dimension_numbers<[2], [2], [1], [1], [0, 0, 0, 1, 1, 1], [0], [0]>} : vector<1x8x8xbf16>, vector<1x8x8xbf16>, vector<1x8x8xf32> -> vector<1x8x8xf32>
    "tpu.trace_stop"() : () -> ()
    %83 = vector.broadcast %4 : vector<1x1x8xf32> to vector<1x8x8xf32>
    %84 = arith.addf %82, %83 : vector<1x8x8xf32>
    %cst_24 = arith.constant dense<0xFF800000> : vector<1x8xf32>
    %85 = vector.multi_reduction <maximumf>, %84, %cst_24 [2] : vector<1x8x8xf32> to vector<1x8xf32>
    %86 = vector.shape_cast %85 : vector<1x8xf32> to vector<1x8x1xf32>
    %87 = vector.broadcast %86 : vector<1x8x1xf32> to vector<1x8x8xf32>
    %88 = arith.subf %84, %87 : vector<1x8x8xf32>
    %89 = math.exp %88 : vector<1x8x8xf32>
    %cst_25 = arith.constant dense<0.000000e+00> : vector<1x8xf32>
    %90 = vector.multi_reduction <add>, %89, %cst_25 [2] : vector<1x8x8xf32> to vector<1x8xf32>
    %91 = vector.shape_cast %90 : vector<1x8xf32> to vector<1x8x1xf32>
    %92 = tpu.reciprocal %91 {approx = true} : vector<1x8x1xf32> -> vector<1x8x1xf32>
    %93 = vector.broadcast %92 : vector<1x8x1xf32> to vector<1x8x8xf32>
    %94 = arith.mulf %89, %93 : vector<1x8x8xf32>
    %95 = arith.truncf %94 : vector<1x8x8xf32> to vector<1x8x8xbf16>
    %96 = arith.truncf %79 : vector<1x8x8xf32> to vector<1x8x8xbf16>
    "tpu.trace_start"() <{level = 10 : i32, message = "bqk,bkd->bqd"}> : () -> ()
    %cst_26 = arith.constant dense<0.000000e+00> : vector<1x8x8xf32>
    %97 = tpu.matmul %95, %96, %cst_26 {dimension_numbers = #tpu.dot_dimension_numbers<[2], [1], [1], [2], [0, 0, 0, 1, 1, 2], [0], [0]>} : vector<1x8x8xbf16>, vector<1x8x8xbf16>, vector<1x8x8xf32> -> vector<1x8x8xf32>
    "tpu.trace_stop"() : () -> ()
    %98 = tpu.concatenate %34, %55, %76, %97 in 2 : vector<1x8x8xf32>, vector<1x8x8xf32>, vector<1x8x8xf32>, vector<1x8x8xf32> -> vector<1x8x32xf32>
    %99 = vector.shape_cast %98 : vector<1x8x32xf32> to vector<8x32xf32>
    %100 = arith.truncf %99 : vector<8x32xf32> to vector<8x32xbf16>
    %c0_27 = arith.constant 0 : index
    %c0_28 = arith.constant 0 : index
    %c0_29 = arith.constant 0 : index
    %101 = vector.load %arg6[%c0_27, %c0_28, %c0_29] : memref<1x32x32xbf16, #tpu.memory_space<vmem>>, vector<1x32x32xbf16>
    %102 = vector.shape_cast %101 : vector<1x32x32xbf16> to vector<32x32xbf16>
    %cst_30 = arith.constant dense<0.000000e+00> : vector<8x32xf32>
    %103 = tpu.matmul %100, %102, %cst_30 {dimension_numbers = #tpu.dot_dimension_numbers<[1], [0], [0], [1], [0, 0, 1, 1], [], []>} : vector<8x32xbf16>, vector<32x32xbf16>, vector<8x32xf32> -> vector<8x32xf32>
    %c0_31 = arith.constant 0 : index
    %c0_32 = arith.constant 0 : index
    %c0_33 = arith.constant 0 : index
    %104 = vector.load %arg7[%c0_31, %c0_32, %c0_33] : memref<1x1x32xf32, #tpu.memory_space<vmem>>, vector<1x1x32xf32>
    %105 = vector.shape_cast %104 : vector<1x1x32xf32> to vector<1x32xf32>
    %106 = vector.broadcast %105 : vector<1x32xf32> to vector<8x32xf32>
    %107 = arith.addf %103, %106 : vector<8x32xf32>
    %108 = arith.addf %3, %107 : vector<8x32xf32>
    %cst_34 = arith.constant dense<0.000000e+00> : vector<8xf32>
    %109 = vector.multi_reduction <add>, %108, %cst_34 [1] : vector<8x32xf32> to vector<8xf32>
    %110 = vector.shape_cast %109 : vector<8xf32> to vector<8x1xf32>
    %cst_35 = arith.constant 3.200000e+01 : f32
    %111 = vector.broadcast %cst_35 : f32 to vector<8x1xf32>
    %112 = arith.divf %110, %111 : vector<8x1xf32>
    %113 = vector.broadcast %112 : vector<8x1xf32> to vector<8x32xf32>
    %114 = arith.subf %108, %113 : vector<8x32xf32>
    %115 = arith.mulf %114, %114 : vector<8x32xf32>
    %cst_36 = arith.constant dense<0.000000e+00> : vector<8xf32>
    %116 = vector.multi_reduction <add>, %115, %cst_36 [1] : vector<8x32xf32> to vector<8xf32>
    %117 = vector.shape_cast %116 : vector<8xf32> to vector<8x1xf32>
    %cst_37 = arith.constant 3.200000e+01 : f32
    %118 = vector.broadcast %cst_37 : f32 to vector<8x1xf32>
    %119 = arith.divf %117, %118 : vector<8x1xf32>
    %cst_38 = arith.constant 9.99999974E-6 : f32
    %120 = vector.broadcast %cst_38 : f32 to vector<8x1xf32>
    %121 = arith.addf %119, %120 : vector<8x1xf32>
    %122 = math.rsqrt %121 : vector<8x1xf32>
    %123 = vector.broadcast %122 : vector<8x1xf32> to vector<8x32xf32>
    %124 = arith.mulf %114, %123 : vector<8x32xf32>
    %c0_39 = arith.constant 0 : index
    %c0_40 = arith.constant 0 : index
    %c0_41 = arith.constant 0 : index
    %125 = vector.load %arg8[%c0_39, %c0_40, %c0_41] : memref<1x1x32xf32, #tpu.memory_space<vmem>>, vector<1x1x32xf32>
    %126 = vector.shape_cast %125 : vector<1x1x32xf32> to vector<1x32xf32>
    %127 = vector.broadcast %126 : vector<1x32xf32> to vector<8x32xf32>
    %128 = arith.mulf %124, %127 : vector<8x32xf32>
    %c0_42 = arith.constant 0 : index
    %c0_43 = arith.constant 0 : index
    %c0_44 = arith.constant 0 : index
    %129 = vector.load %arg9[%c0_42, %c0_43, %c0_44] : memref<1x1x32xf32, #tpu.memory_space<vmem>>, vector<1x1x32xf32>
    %130 = vector.shape_cast %129 : vector<1x1x32xf32> to vector<1x32xf32>
    %131 = vector.broadcast %130 : vector<1x32xf32> to vector<8x32xf32>
    %132 = arith.addf %128, %131 : vector<8x32xf32>
    %133 = arith.truncf %132 : vector<8x32xf32> to vector<8x32xbf16>
    %c0_45 = arith.constant 0 : index
    %c0_46 = arith.constant 0 : index
    %c0_47 = arith.constant 0 : index
    %134 = vector.load %arg10[%c0_45, %c0_46, %c0_47] : memref<1x32x64xbf16, #tpu.memory_space<vmem>>, vector<1x32x64xbf16>
    %135 = vector.shape_cast %134 : vector<1x32x64xbf16> to vector<32x64xbf16>
    %cst_48 = arith.constant dense<0.000000e+00> : vector<8x64xf32>
    %136 = tpu.matmul %133, %135, %cst_48 {dimension_numbers = #tpu.dot_dimension_numbers<[1], [0], [0], [1], [0, 0, 1, 1], [], []>} : vector<8x32xbf16>, vector<32x64xbf16>, vector<8x64xf32> -> vector<8x64xf32>
    %c0_49 = arith.constant 0 : index
    %c0_50 = arith.constant 0 : index
    %c0_51 = arith.constant 0 : index
    %137 = vector.load %arg11[%c0_49, %c0_50, %c0_51] : memref<1x1x64xf32, #tpu.memory_space<vmem>>, vector<1x1x64xf32>
    %138 = vector.shape_cast %137 : vector<1x1x64xf32> to vector<1x64xf32>
    %139 = vector.broadcast %138 : vector<1x64xf32> to vector<8x64xf32>
    %140 = arith.addf %136, %139 : vector<8x64xf32>
    %cst_52 = arith.constant 0.000000e+00 : f32
    %141 = vector.broadcast %cst_52 : f32 to vector<8x64xf32>
    %142 = arith.maximumf %140, %141 : vector<8x64xf32>
    %143 = arith.truncf %142 : vector<8x64xf32> to vector<8x64xbf16>
    %c0_53 = arith.constant 0 : index
    %c0_54 = arith.constant 0 : index
    %c0_55 = arith.constant 0 : index
    %144 = vector.load %arg12[%c0_53, %c0_54, %c0_55] : memref<1x64x32xbf16, #tpu.memory_space<vmem>>, vector<1x64x32xbf16>
    %145 = vector.shape_cast %144 : vector<1x64x32xbf16> to vector<64x32xbf16>
    %cst_56 = arith.constant dense<0.000000e+00> : vector<8x32xf32>
    %146 = tpu.matmul %143, %145, %cst_56 {dimension_numbers = #tpu.dot_dimension_numbers<[1], [0], [0], [1], [0, 0, 1, 1], [], []>} : vector<8x64xbf16>, vector<64x32xbf16>, vector<8x32xf32> -> vector<8x32xf32>
    %c0_57 = arith.constant 0 : index
    %c0_58 = arith.constant 0 : index
    %c0_59 = arith.constant 0 : index
    %147 = vector.load %arg13[%c0_57, %c0_58, %c0_59] : memref<1x1x32xf32, #tpu.memory_space<vmem>>, vector<1x1x32xf32>
    %148 = vector.shape_cast %147 : vector<1x1x32xf32> to vector<1x32xf32>
    %149 = vector.broadcast %148 : vector<1x32xf32> to vector<8x32xf32>
    %150 = arith.addf %146, %149 : vector<8x32xf32>
    %151 = arith.addf %132, %150 : vector<8x32xf32>
    %cst_60 = arith.constant dense<0.000000e+00> : vector<8xf32>
    %152 = vector.multi_reduction <add>, %151, %cst_60 [1] : vector<8x32xf32> to vector<8xf32>
    %153 = vector.shape_cast %152 : vector<8xf32> to vector<8x1xf32>
    %cst_61 = arith.constant 3.200000e+01 : f32
    %154 = vector.broadcast %cst_61 : f32 to vector<8x1xf32>
    %155 = arith.divf %153, %154 : vector<8x1xf32>
    %156 = vector.broadcast %155 : vector<8x1xf32> to vector<8x32xf32>
    %157 = arith.subf %151, %156 : vector<8x32xf32>
    %158 = arith.mulf %157, %157 : vector<8x32xf32>
    %cst_62 = arith.constant dense<0.000000e+00> : vector<8xf32>
    %159 = vector.multi_reduction <add>, %158, %cst_62 [1] : vector<8x32xf32> to vector<8xf32>
    %160 = vector.shape_cast %159 : vector<8xf32> to vector<8x1xf32>
    %cst_63 = arith.constant 3.200000e+01 : f32
    %161 = vector.broadcast %cst_63 : f32 to vector<8x1xf32>
    %162 = arith.divf %160, %161 : vector<8x1xf32>
    %cst_64 = arith.constant 9.99999974E-6 : f32
    %163 = vector.broadcast %cst_64 : f32 to vector<8x1xf32>
    %164 = arith.addf %162, %163 : vector<8x1xf32>
    %165 = math.rsqrt %164 : vector<8x1xf32>
    %166 = vector.broadcast %165 : vector<8x1xf32> to vector<8x32xf32>
    %167 = arith.mulf %157, %166 : vector<8x32xf32>
    %c0_65 = arith.constant 0 : index
    %c0_66 = arith.constant 0 : index
    %c0_67 = arith.constant 0 : index
    %168 = vector.load %arg14[%c0_65, %c0_66, %c0_67] : memref<1x1x32xf32, #tpu.memory_space<vmem>>, vector<1x1x32xf32>
    %169 = vector.shape_cast %168 : vector<1x1x32xf32> to vector<1x32xf32>
    %170 = vector.broadcast %169 : vector<1x32xf32> to vector<8x32xf32>
    %171 = arith.mulf %167, %170 : vector<8x32xf32>
    %c0_68 = arith.constant 0 : index
    %c0_69 = arith.constant 0 : index
    %c0_70 = arith.constant 0 : index
    %172 = vector.load %arg15[%c0_68, %c0_69, %c0_70] : memref<1x1x32xf32, #tpu.memory_space<vmem>>, vector<1x1x32xf32>
    %173 = vector.shape_cast %172 : vector<1x1x32xf32> to vector<1x32xf32>
    %174 = vector.broadcast %173 : vector<1x32xf32> to vector<8x32xf32>
    %175 = arith.addf %171, %174 : vector<8x32xf32>
    %c0_71 = arith.constant 0 : index
    %c0_72 = arith.constant 0 : index
    %176 = vector.load %arg17[%c0_71, %c0_72] : memref<8x32xf32, #tpu.memory_space<vmem>>, vector<8x32xf32>
    tpu.vector_store %arg17[%c0_71, %c0_72], %175 {strides = array<i32>} : memref<8x32xf32, #tpu.memory_space<vmem>>, vector<8x32xf32>,
    %c1_i32 = arith.constant 1 : i32
    %177 = arith.cmpi eq, %arg1, %c1_i32 : i32
    %178 = arith.extui %177 : i1 to i32
    %c0_i32_73 = arith.constant 0 : i32
    %179 = arith.cmpi ne, %178, %c0_i32_73 : i32
    scf.if %179 {
      %180 = vector.shape_cast %175 : vector<8x32xf32> to vector<1x8x32xf32>
      %c0_74 = arith.constant 0 : index
      %c0_75 = arith.constant 0 : index
      %c0_76 = arith.constant 0 : index
      %181 = vector.load %arg16[%c0_74, %c0_75, %c0_76] : memref<1x8x32xf32, #tpu.memory_space<vmem>>, vector<1x8x32xf32>
      tpu.vector_store %arg16[%c0_74, %c0_75, %c0_76], %180 {strides = array<i32>} : memref<1x8x32xf32, #tpu.memory_space<vmem>>, vector<1x8x32xf32>,
    } else {
    }
    return
  }
  func.func @transform_0(%arg0: i32, %arg1: i32) -> (i32, i32, i32) {
    %c0_i32 = arith.constant 0 : i32
    %c0_i32_0 = arith.constant 0 : i32
    %c0_i32_1 = arith.constant 0 : i32
    return %arg0, %c0_i32, %c0_i32_0 : i32, i32, i32
  }
  func.func @transform_1(%arg0: i32, %arg1: i32) -> (i32, i32, i32) {
    %c0_i32 = arith.constant 0 : i32
    %c0_i32_0 = arith.constant 0 : i32
    %c0_i32_1 = arith.constant 0 : i32
    return %arg0, %c0_i32, %c0_i32_0 : i32, i32, i32
  }
  func.func @transform_2(%arg0: i32, %arg1: i32) -> (i32, i32, i32) {
    %c0_i32 = arith.constant 0 : i32
    %c0_i32_0 = arith.constant 0 : i32
    %c0_i32_1 = arith.constant 0 : i32
    return %arg1, %c0_i32, %c0_i32_0 : i32, i32, i32
  }
  func.func @transform_3(%arg0: i32, %arg1: i32) -> (i32, i32, i32) {
    %c0_i32 = arith.constant 0 : i32
    %c0_i32_0 = arith.constant 0 : i32
    %c0_i32_1 = arith.constant 0 : i32
    return %arg1, %c0_i32, %c0_i32_0 : i32, i32, i32
  }
  func.func @transform_4(%arg0: i32, %arg1: i32) -> (i32, i32, i32) {
    %c0_i32 = arith.constant 0 : i32
    %c0_i32_0 = arith.constant 0 : i32
    %c0_i32_1 = arith.constant 0 : i32
    return %arg1, %c0_i32, %c0_i32_0 : i32, i32, i32
  }
  func.func @transform_5(%arg0: i32, %arg1: i32) -> (i32, i32, i32) {
    %c0_i32 = arith.constant 0 : i32
    %c0_i32_0 = arith.constant 0 : i32
    %c0_i32_1 = arith.constant 0 : i32
    return %arg1, %c0_i32, %c0_i32_0 : i32, i32, i32
  }
  func.func @transform_6(%arg0: i32, %arg1: i32) -> (i32, i32, i32) {
    %c0_i32 = arith.constant 0 : i32
    %c0_i32_0 = arith.constant 0 : i32
    %c0_i32_1 = arith.constant 0 : i32
    return %arg1, %c0_i32, %c0_i32_0 : i32, i32, i32
  }
  func.func @transform_7(%arg0: i32, %arg1: i32) -> (i32, i32, i32) {
    %c0_i32 = arith.constant 0 : i32
    %c0_i32_0 = arith.constant 0 : i32
    %c0_i32_1 = arith.constant 0 : i32
    return %arg1, %c0_i32, %c0_i32_0 : i32, i32, i32
  }
  func.func @transform_8(%arg0: i32, %arg1: i32) -> (i32, i32, i32) {
    %c0_i32 = arith.constant 0 : i32
    %c0_i32_0 = arith.constant 0 : i32
    %c0_i32_1 = arith.constant 0 : i32
    return %arg1, %c0_i32, %c0_i32_0 : i32, i32, i32
  }
  func.func @transform_9(%arg0: i32, %arg1: i32) -> (i32, i32, i32) {
    %c0_i32 = arith.constant 0 : i32
    %c0_i32_0 = arith.constant 0 : i32
    %c0_i32_1 = arith.constant 0 : i32
    return %arg1, %c0_i32, %c0_i32_0 : i32, i32, i32
  }
  func.func @transform_10(%arg0: i32, %arg1: i32) -> (i32, i32, i32) {
    %c0_i32 = arith.constant 0 : i32
    %c0_i32_0 = arith.constant 0 : i32
    %c0_i32_1 = arith.constant 0 : i32
    return %arg1, %c0_i32, %c0_i32_0 : i32, i32, i32
  }
  func.func @transform_11(%arg0: i32, %arg1: i32) -> (i32, i32, i32) {
    %c0_i32 = arith.constant 0 : i32
    %c0_i32_0 = arith.constant 0 : i32
    %c0_i32_1 = arith.constant 0 : i32
    return %arg1, %c0_i32, %c0_i32_0 : i32, i32, i32
  }
  func.func @transform_12(%arg0: i32, %arg1: i32) -> (i32, i32, i32) {
    %c0_i32 = arith.constant 0 : i32
    %c0_i32_0 = arith.constant 0 : i32
    %c0_i32_1 = arith.constant 0 : i32
    return %arg1, %c0_i32, %c0_i32_0 : i32, i32, i32
  }
  func.func @transform_13(%arg0: i32, %arg1: i32) -> (i32, i32, i32) {
    %c0_i32 = arith.constant 0 : i32
    %c0_i32_0 = arith.constant 0 : i32
    %c0_i32_1 = arith.constant 0 : i32
    return %arg1, %c0_i32, %c0_i32_0 : i32, i32, i32
  }
  func.func @transform_14(%arg0: i32, %arg1: i32) -> (i32, i32, i32) {
    %c0_i32 = arith.constant 0 : i32
    %c0_i32_0 = arith.constant 0 : i32
    %c0_i32_1 = arith.constant 0 : i32
    return %arg0, %c0_i32, %c0_i32_0 : i32, i32, i32
  }
}

</mosaic_0001>

<llo_original>
// kernel: encoder_forward.1
$region0: #{encoder_forward.1}
  #allocation0 [shape = 'u32[]', space=smem, size = 0x4, offset = 0x4, fixed_abs, tag = 'smem constant byte address 0x4 - core index']
  #allocation1 [shape = 'u32[144,128]{1,0:T(1,128)}', space=vmem, size = 0x12000, scoped, tag = 'internal scratch']
  #allocation2 [shape = 'f32[8,32]{1,0:T(8,128)}', space=vmem, size = 0x1000, scoped, tag = 'scratch operand']
  %s0 = inlined_call_operand.vmem [shape: f32[2,8,32], index: 0, kind: input, shape index: {}]
  %s1 = inlined_call_operand.vmem [shape: f32[2,1,8], index: 1, kind: input, shape index: {}]
  %s2 = inlined_call_operand.vmem [shape: bf16[2,32,96], index: 2, kind: input, shape index: {}]
  %s3 = inlined_call_operand.vmem [shape: f32[2,1,96], index: 3, kind: input, shape index: {}]
  %s4 = inlined_call_operand.vmem [shape: bf16[2,32,32], index: 4, kind: input, shape index: {}]
  %s5 = inlined_call_operand.vmem [shape: f32[2,1,32], index: 5, kind: input, shape index: {}]
  %s6 = inlined_call_operand.vmem [shape: f32[2,1,32], index: 6, kind: input, shape index: {}]
  %s7 = inlined_call_operand.vmem [shape: f32[2,1,32], index: 7, kind: input, shape index: {}]
  %s8 = inlined_call_operand.vmem [shape: bf16[2,32,64], index: 8, kind: input, shape index: {}]
  %s9 = inlined_call_operand.vmem [shape: f32[2,1,64], index: 9, kind: input, shape index: {}]
  %s10 = inlined_call_operand.vmem [shape: bf16[2,64,32], index: 10, kind: input, shape index: {}]
  %s11 = inlined_call_operand.vmem [shape: f32[2,1,32], index: 11, kind: input, shape index: {}]
  %s12 = inlined_call_operand.vmem [shape: f32[2,1,32], index: 12, kind: input, shape index: {}]
  %s13 = inlined_call_operand.vmem [shape: f32[2,1,32], index: 13, kind: input, shape index: {}]
  %s14 = inlined_call_operand.vmem [shape: f32[2,8,32], index: 14, kind: output, shape index: {}]
  %s15 = sld [smem:[#allocation0]]
  $region97: #{encoder_forward.1} parent=0
    _
  %s17 = ssub.s32 1, %s15
  %s18 = scalar_select 0, %s17, %s15
  loop: start=0, step=1, limit=6
  $region2: #{encoder_forward.1} parent=0 // loop_pre_header
    _
  $region3: #{encoder_forward.1} parent=0 // loop_header
    %s20 = sphi 0, %s24
    %p21 = scmp.ge.s32.totalorder %s20, 6
    %s27 = sphi 0, %s39
    %s28 = sphi 0, %s35
    %s29 = sphi 0, %s27
    %s30 = sphi 0, %s28
    %s31 = sphi 0, %s29
    %s32 = sphi 0, %s30
    %s42 = sphi 0, %s44
    %s45 = sphi 0, %s42
    %s46 = sphi 0, %s45
    %s62 = sphi 0, %s46
    %s68 = sphi 0, %s70
    %s71 = sphi 0, %s68
    %s72 = sphi 0, %s71
    %s88 = sphi 0, %s72
    %s94 = sphi 0, %s96
    %s97 = sphi 0, %s94
    %s98 = sphi 0, %s97
    %s114 = sphi 0, %s98
    %s120 = sphi 0, %s122
    %s123 = sphi 0, %s120
    %s124 = sphi 0, %s123
    %s140 = sphi 0, %s124
    %s146 = sphi 0, %s148
    %s149 = sphi 0, %s146
    %s150 = sphi 0, %s149
    %s166 = sphi 0, %s150
    %s172 = sphi 0, %s174
    %s175 = sphi 0, %s172
    %s176 = sphi 0, %s175
    %s192 = sphi 0, %s176
    %s198 = sphi 0, %s200
    %s201 = sphi 0, %s198
    %s202 = sphi 0, %s201
    %s218 = sphi 0, %s202
    %s224 = sphi 0, %s226
    %s227 = sphi 0, %s224
    %s228 = sphi 0, %s227
    %s244 = sphi 0, %s228
    %s250 = sphi 0, %s252
    %s253 = sphi 0, %s250
    %s254 = sphi 0, %s253
    %s270 = sphi 0, %s254
    %s276 = sphi 0, %s278
    %s279 = sphi 0, %s276
    %s280 = sphi 0, %s279
    %s296 = sphi 0, %s280
    %s302 = sphi 0, %s304
    %s305 = sphi 0, %s302
    %s306 = sphi 0, %s305
    %s322 = sphi 0, %s306
    %s328 = sphi 0, %s330
    %s331 = sphi 0, %s328
    %s332 = sphi 0, %s331
    %s348 = sphi 0, %s332
    %s354 = sphi 0, %s356
    %s357 = sphi 0, %s354
    %s358 = sphi 0, %s357
    %s374 = sphi 0, %s358
    %s380 = sphi 0, %s382
    %s383 = sphi 0, %s380
    %s384 = sphi 0, %s383
    %s400 = sphi 0, %s384
    %s406 = sphi 0, %s408
    %s409 = sphi 0, %s406
    %s410 = sphi 0, %s409
    %s426 = sphi 0, %s410
  $region4: #{encoder_forward.1} parent=0 // loop_header_branch
    %23 = sbr.rel (%p21) target = $region8
  $region5: #{encoder_forward.1} parent=0 // loop_body
    %s25 = ssub.s32 %s20, 1
    %s26 = ssub.s32 %s20, 2
    %s33 = sadd.s32 1, %s28
    %p34 = scmp.ge.s32.totalorder %s33, 2
    %s35 = scalar_select %p34, 0, %s33
    %s36 = sadd.s32 1, %s27
    %s37 = scalar_select %p34, %s36, %s27
    %p38 = scmp.ge.s32.totalorder %s37, 2
    %s39 = scalar_select %p38, 0, %s37
    %s40 = ssub.s32 %s27, %s39
    %p41 = scmp.eq.s32.totalorder %s40, 0
    %s43 = sadd.s32 %s42, 1
    %s44 = scalar_select %p41, %s42, %s43
    %p47 = pneg %p41
    %p48 = scmp.eq.s32.totalorder %s20, 3
    %p49 = por %p47, %p48
    %p50 = scmp.ne.s32.totalorder %s42, %s45
    %p51 = scmp.eq.s32.totalorder %s20, 0
    %p52 = por %p50, %p51
    %p53 = scmp.ne.s32.totalorder %s42, %s45
    %p54 = scmp.eq.s32.totalorder %s25, 3
    %p55 = por %p53, %p54
    %p56 = scmp.ne.s32.totalorder %s45, %s46
    %p57 = scmp.eq.s32.totalorder %s25, 0
    %p58 = por %p56, %p57
    %p59 = scmp.ne.s32.totalorder %s45, %s46
    %p60 = scmp.eq.s32.totalorder %s26, 3
    %p61 = por %p59, %p60
    %p63 = scmp.ne.s32.totalorder %s46, %s62
    %p64 = scmp.eq.s32.totalorder %s26, 0
    %p65 = por %p63, %p64
    %s66 = ssub.s32 %s27, %s39
    %p67 = scmp.eq.s32.totalorder %s66, 0
    %s69 = sadd.s32 %s68, 1
    %s70 = scalar_select %p67, %s68, %s69
    %p73 = pneg %p67
    %p74 = scmp.eq.s32.totalorder %s20, 3
    %p75 = por %p73, %p74
    %p76 = scmp.ne.s32.totalorder %s68, %s71
    %p77 = scmp.eq.s32.totalorder %s20, 0
    %p78 = por %p76, %p77
    %p79 = scmp.ne.s32.totalorder %s68, %s71
    %p80 = scmp.eq.s32.totalorder %s25, 3
    %p81 = por %p79, %p80
    %p82 = scmp.ne.s32.totalorder %s71, %s72
    %p83 = scmp.eq.s32.totalorder %s25, 0
    %p84 = por %p82, %p83
    %p85 = scmp.ne.s32.totalorder %s71, %s72
    %p86 = scmp.eq.s32.totalorder %s26, 3
    %p87 = por %p85, %p86
    %p89 = scmp.ne.s32.totalorder %s72, %s88
    %p90 = scmp.eq.s32.totalorder %s26, 0
    %p91 = por %p89, %p90
    %s92 = ssub.s32 %s28, %s35
    %p93 = scmp.eq.s32.totalorder %s92, 0
    %s95 = sadd.s32 %s94, 1
    %s96 = scalar_select %p93, %s94, %s95
    %p99 = pneg %p93
    %p100 = scmp.eq.s32.totalorder %s20, 3
    %p101 = por %p99, %p100
    %p102 = scmp.ne.s32.totalorder %s94, %s97
    %p103 = scmp.eq.s32.totalorder %s20, 0
    %p104 = por %p102, %p103
    %p105 = scmp.ne.s32.totalorder %s94, %s97
    %p106 = scmp.eq.s32.totalorder %s25, 3
    %p107 = por %p105, %p106
    %p108 = scmp.ne.s32.totalorder %s97, %s98
    %p109 = scmp.eq.s32.totalorder %s25, 0
    %p110 = por %p108, %p109
    %p111 = scmp.ne.s32.totalorder %s97, %s98
    %p112 = scmp.eq.s32.totalorder %s26, 3
    %p113 = por %p111, %p112
    %p115 = scmp.ne.s32.totalorder %s98, %s114
    %p116 = scmp.eq.s32.totalorder %s26, 0
    %p117 = por %p115, %p116
    %s118 = ssub.s32 %s28, %s35
    %p119 = scmp.eq.s32.totalorder %s118, 0
    %s121 = sadd.s32 %s120, 1
    %s122 = scalar_select %p119, %s120, %s121
    %p125 = pneg %p119
    %p126 = scmp.eq.s32.totalorder %s20, 3
    %p127 = por %p125, %p126
    %p128 = scmp.ne.s32.totalorder %s120, %s123
    %p129 = scmp.eq.s32.totalorder %s20, 0
    %p130 = por %p128, %p129
    %p131 = scmp.ne.s32.totalorder %s120, %s123
    %p132 = scmp.eq.s32.totalorder %s25, 3
    %p133 = por %p131, %p132
    %p134 = scmp.ne.s32.totalorder %s123, %s124
    %p135 = scmp.eq.s32.totalorder %s25, 0
    %p136 = por %p134, %p135
    %p137 = scmp.ne.s32.totalorder %s123, %s124
    %p138 = scmp.eq.s32.totalorder %s26, 3
    %p139 = por %p137, %p138
    %p141 = scmp.ne.s32.totalorder %s124, %s140
    %p142 = scmp.eq.s32.totalorder %s26, 0
    %p143 = por %p141, %p142
    %s144 = ssub.s32 %s28, %s35
    %p145 = scmp.eq.s32.totalorder %s144, 0
    %s147 = sadd.s32 %s146, 1
    %s148 = scalar_select %p145, %s146, %s147
    %p151 = pneg %p145
    %p152 = scmp.eq.s32.totalorder %s20, 3
    %p153 = por %p151, %p152
    %p154 = scmp.ne.s32.totalorder %s146, %s149
    %p155 = scmp.eq.s32.totalorder %s20, 0
    %p156 = por %p154, %p155
    %p157 = scmp.ne.s32.totalorder %s146, %s149
    %p158 = scmp.eq.s32.totalorder %s25, 3
    %p159 = por %p157, %p158
    %p160 = scmp.ne.s32.totalorder %s149, %s150
    %p161 = scmp.eq.s32.totalorder %s25, 0
    %p162 = por %p160, %p161
    %p163 = scmp.ne.s32.totalorder %s149, %s150
    %p164 = scmp.eq.s32.totalorder %s26, 3
    %p165 = por %p163, %p164
    %p167 = scmp.ne.s32.totalorder %s150, %s166
    %p168 = scmp.eq.s32.totalorder %s26, 0
    %p169 = por %p167, %p168
    %s170 = ssub.s32 %s28, %s35
    %p171 = scmp.eq.s32.totalorder %s170, 0
    %s173 = sadd.s32 %s172, 1
    %s174 = scalar_select %p171, %s172, %s173
    %p177 = pneg %p171
    %p178 = scmp.eq.s32.totalorder %s20, 3
    %p179 = por %p177, %p178
    %p180 = scmp.ne.s32.totalorder %s172, %s175
    %p181 = scmp.eq.s32.totalorder %s20, 0
    %p182 = por %p180, %p181
    %p183 = scmp.ne.s32.totalorder %s172, %s175
    %p184 = scmp.eq.s32.totalorder %s25, 3
    %p185 = por %p183, %p184
    %p186 = scmp.ne.s32.totalorder %s175, %s176
    %p187 = scmp.eq.s32.totalorder %s25, 0
    %p188 = por %p186, %p187
    %p189 = scmp.ne.s32.totalorder %s175, %s176
    %p190 = scmp.eq.s32.totalorder %s26, 3
    %p191 = por %p189, %p190
    %p193 = scmp.ne.s32.totalorder %s176, %s192
    %p194 = scmp.eq.s32.totalorder %s26, 0
    %p195 = por %p193, %p194
    %s196 = ssub.s32 %s28, %s35
    %p197 = scmp.eq.s32.totalorder %s196, 0
    %s199 = sadd.s32 %s198, 1
    %s200 = scalar_select %p197, %s198, %s199
    %p203 = pneg %p197
    %p204 = scmp.eq.s32.totalorder %s20, 3
    %p205 = por %p203, %p204
    %p206 = scmp.ne.s32.totalorder %s198, %s201
    %p207 = scmp.eq.s32.totalorder %s20, 0
    %p208 = por %p206, %p207
    %p209 = scmp.ne.s32.totalorder %s198, %s201
    %p210 = scmp.eq.s32.totalorder %s25, 3
    %p211 = por %p209, %p210
    %p212 = scmp.ne.s32.totalorder %s201, %s202
    %p213 = scmp.eq.s32.totalorder %s25, 0
    %p214 = por %p212, %p213
    %p215 = scmp.ne.s32.totalorder %s201, %s202
    %p216 = scmp.eq.s32.totalorder %s26, 3
    %p217 = por %p215, %p216
    %p219 = scmp.ne.s32.totalorder %s202, %s218
    %p220 = scmp.eq.s32.totalorder %s26, 0
    %p221 = por %p219, %p220
    %s222 = ssub.s32 %s28, %s35
    %p223 = scmp.eq.s32.totalorder %s222, 0
    %s225 = sadd.s32 %s224, 1
    %s226 = scalar_select %p223, %s224, %s225
    %p229 = pneg %p223
    %p230 = scmp.eq.s32.totalorder %s20, 3
    %p231 = por %p229, %p230
    %p232 = scmp.ne.s32.totalorder %s224, %s227
    %p233 = scmp.eq.s32.totalorder %s20, 0
    %p234 = por %p232, %p233
    %p235 = scmp.ne.s32.totalorder %s224, %s227
    %p236 = scmp.eq.s32.totalorder %s25, 3
    %p237 = por %p235, %p236
    %p238 = scmp.ne.s32.totalorder %s227, %s228
    %p239 = scmp.eq.s32.totalorder %s25, 0
    %p240 = por %p238, %p239
    %p241 = scmp.ne.s32.totalorder %s227, %s228
    %p242 = scmp.eq.s32.totalorder %s26, 3
    %p243 = por %p241, %p242
    %p245 = scmp.ne.s32.totalorder %s228, %s244
    %p246 = scmp.eq.s32.totalorder %s26, 0
    %p247 = por %p245, %p246
    %s248 = ssub.s32 %s28, %s35
    %p249 = scmp.eq.s32.totalorder %s248, 0
    %s251 = sadd.s32 %s250, 1
    %s252 = scalar_select %p249, %s250, %s251
    %p255 = pneg %p249
    %p256 = scmp.eq.s32.totalorder %s20, 3
    %p257 = por %p255, %p256
    %p258 = scmp.ne.s32.totalorder %s250, %s253
    %p259 = scmp.eq.s32.totalorder %s20, 0
    %p260 = por %p258, %p259
    %p261 = scmp.ne.s32.totalorder %s250, %s253
    %p262 = scmp.eq.s32.totalorder %s25, 3
    %p263 = por %p261, %p262
    %p264 = scmp.ne.s32.totalorder %s253, %s254
    %p265 = scmp.eq.s32.totalorder %s25, 0
    %p266 = por %p264, %p265
    %p267 = scmp.ne.s32.totalorder %s253, %s254
    %p268 = scmp.eq.s32.totalorder %s26, 3
    %p269 = por %p267, %p268
    %p271 = scmp.ne.s32.totalorder %s254, %s270
    %p272 = scmp.eq.s32.totalorder %s26, 0
    %p273 = por %p271, %p272
    %s274 = ssub.s32 %s28, %s35
    %p275 = scmp.eq.s32.totalorder %s274, 0
    %s277 = sadd.s32 %s276, 1
    %s278 = scalar_select %p275, %s276, %s277
    %p281 = pneg %p275
    %p282 = scmp.eq.s32.totalorder %s20, 3
    %p283 = por %p281, %p282
    %p284 = scmp.ne.s32.totalorder %s276, %s279
    %p285 = scmp.eq.s32.totalorder %s20, 0
    %p286 = por %p284, %p285
    %p287 = scmp.ne.s32.totalorder %s276, %s279
    %p288 = scmp.eq.s32.totalorder %s25, 3
    %p289 = por %p287, %p288
    %p290 = scmp.ne.s32.totalorder %s279, %s280
    %p291 = scmp.eq.s32.totalorder %s25, 0
    %p292 = por %p290, %p291
    %p293 = scmp.ne.s32.totalorder %s279, %s280
    %p294 = scmp.eq.s32.totalorder %s26, 3
    %p295 = por %p293, %p294
    %p297 = scmp.ne.s32.totalorder %s280, %s296
    %p298 = scmp.eq.s32.totalorder %s26, 0
    %p299 = por %p297, %p298
    %s300 = ssub.s32 %s28, %s35
    %p301 = scmp.eq.s32.totalorder %s300, 0
    %s303 = sadd.s32 %s302, 1
    %s304 = scalar_select %p301, %s302, %s303
    %p307 = pneg %p301
    %p308 = scmp.eq.s32.totalorder %s20, 3
    %p309 = por %p307, %p308
    %p310 = scmp.ne.s32.totalorder %s302, %s305
    %p311 = scmp.eq.s32.totalorder %s20, 0
    %p312 = por %p310, %p311
    %p313 = scmp.ne.s32.totalorder %s302, %s305
    %p314 = scmp.eq.s32.totalorder %s25, 3
    %p315 = por %p313, %p314
    %p316 = scmp.ne.s32.totalorder %s305, %s306
    %p317 = scmp.eq.s32.totalorder %s25, 0
    %p318 = por %p316, %p317
    %p319 = scmp.ne.s32.totalorder %s305, %s306
    %p320 = scmp.eq.s32.totalorder %s26, 3
    %p321 = por %p319, %p320
    %p323 = scmp.ne.s32.totalorder %s306, %s322
    %p324 = scmp.eq.s32.totalorder %s26, 0
    %p325 = por %p323, %p324
    %s326 = ssub.s32 %s28, %s35
    %p327 = scmp.eq.s32.totalorder %s326, 0
    %s329 = sadd.s32 %s328, 1
    %s330 = scalar_select %p327, %s328, %s329
    %p333 = pneg %p327
    %p334 = scmp.eq.s32.totalorder %s20, 3
    %p335 = por %p333, %p334
    %p336 = scmp.ne.s32.totalorder %s328, %s331
    %p337 = scmp.eq.s32.totalorder %s20, 0
    %p338 = por %p336, %p337
    %p339 = scmp.ne.s32.totalorder %s328, %s331
    %p340 = scmp.eq.s32.totalorder %s25, 3
    %p341 = por %p339, %p340
    %p342 = scmp.ne.s32.totalorder %s331, %s332
    %p343 = scmp.eq.s32.totalorder %s25, 0
    %p344 = por %p342, %p343
    %p345 = scmp.ne.s32.totalorder %s331, %s332
    %p346 = scmp.eq.s32.totalorder %s26, 3
    %p347 = por %p345, %p346
    %p349 = scmp.ne.s32.totalorder %s332, %s348
    %p350 = scmp.eq.s32.totalorder %s26, 0
    %p351 = por %p349, %p350
    %s352 = ssub.s32 %s28, %s35
    %p353 = scmp.eq.s32.totalorder %s352, 0
    %s355 = sadd.s32 %s354, 1
    %s356 = scalar_select %p353, %s354, %s355
    %p359 = pneg %p353
    %p360 = scmp.eq.s32.totalorder %s20, 3
    %p361 = por %p359, %p360
    %p362 = scmp.ne.s32.totalorder %s354, %s357
    %p363 = scmp.eq.s32.totalorder %s20, 0
    %p364 = por %p362, %p363
    %p365 = scmp.ne.s32.totalorder %s354, %s357
    %p366 = scmp.eq.s32.totalorder %s25, 3
    %p367 = por %p365, %p366
    %p368 = scmp.ne.s32.totalorder %s357, %s358
    %p369 = scmp.eq.s32.totalorder %s25, 0
    %p370 = por %p368, %p369
    %p371 = scmp.ne.s32.totalorder %s357, %s358
    %p372 = scmp.eq.s32.totalorder %s26, 3
    %p373 = por %p371, %p372
    %p375 = scmp.ne.s32.totalorder %s358, %s374
    %p376 = scmp.eq.s32.totalorder %s26, 0
    %p377 = por %p375, %p376
    %s378 = ssub.s32 %s28, %s35
    %p379 = scmp.eq.s32.totalorder %s378, 0
    %s381 = sadd.s32 %s380, 1
    %s382 = scalar_select %p379, %s380, %s381
    %p385 = pneg %p379
    %p386 = scmp.eq.s32.totalorder %s20, 3
    %p387 = por %p385, %p386
    %p388 = scmp.ne.s32.totalorder %s380, %s383
    %p389 = scmp.eq.s32.totalorder %s20, 0
    %p390 = por %p388, %p389
    %p391 = scmp.ne.s32.totalorder %s380, %s383
    %p392 = scmp.eq.s32.totalorder %s25, 3
    %p393 = por %p391, %p392
    %p394 = scmp.ne.s32.totalorder %s383, %s384
    %p395 = scmp.eq.s32.totalorder %s25, 0
    %p396 = por %p394, %p395
    %p397 = scmp.ne.s32.totalorder %s383, %s384
    %p398 = scmp.eq.s32.totalorder %s26, 3
    %p399 = por %p397, %p398
    %p401 = scmp.ne.s32.totalorder %s384, %s400
    %p402 = scmp.eq.s32.totalorder %s26, 0
    %p403 = por %p401, %p402
    %s404 = ssub.s32 %s27, %s39
    %p405 = scmp.eq.s32.totalorder %s404, 0
    %s407 = sadd.s32 %s406, 1
    %s408 = scalar_select %p405, %s406, %s407
    %p411 = pneg %p405
    %p412 = scmp.eq.s32.totalorder %s20, 3
    %p413 = por %p411, %p412
    %p414 = scmp.ne.s32.totalorder %s406, %s409
    %p415 = scmp.eq.s32.totalorder %s20, 0
    %p416 = por %p414, %p415
    %p417 = scmp.ne.s32.totalorder %s406, %s409
    %p418 = scmp.eq.s32.totalorder %s25, 3
    %p419 = por %p417, %p418
    %p420 = scmp.ne.s32.totalorder %s409, %s410
    %p421 = scmp.eq.s32.totalorder %s25, 0
    %p422 = por %p420, %p421
    %p423 = scmp.ne.s32.totalorder %s409, %s410
    %p424 = scmp.eq.s32.totalorder %s26, 3
    %p425 = por %p423, %p424
    %p427 = scmp.ne.s32.totalorder %s410, %s426
    %p428 = scmp.eq.s32.totalorder %s26, 0
    %p429 = por %p427, %p428
    %p430 = scmp.le.s32.totalorder 1, %s20
    %p431 = scmp.lt.s32.totalorder %s20, 5
    %p432 = pnand %p430, %p431
    %p433 = pneg %p432
    // Predicated region
    $region9: #{encoder_forward.1} parent=5 // pred_check
      _
    $region10: #{encoder_forward.1} parent=5 // pred_check_branch
      %435 = sbr.rel (%p432) target = $region12
    $region11: #{encoder_forward.1} parent=5 // pred_region
      %s436 = ssub.s32 %s20, 1
    $region12: #{encoder_forward.1} parent=5 // pred_fallthru
      _
    %p437 = scmp.lt.s32.totalorder %s20, 4
    // Predicated region
    $region13: #{encoder_forward.1} parent=5 // pred_check
      %p438 = pneg %p437
    $region14: #{encoder_forward.1} parent=5 // pred_check_branch
      %440 = sbr.rel (%p438) target = $region16
    $region15: #{encoder_forward.1} parent=5 // pred_region
      // Predicated region
      $region17: #{encoder_forward.1} parent=15 // pred_check
        %p441 = pneg %p52
      $region18: #{encoder_forward.1} parent=15 // pred_check_branch
        %443 = sbr.rel (%p441) target = $region20
      $region19: #{encoder_forward.1} parent=15 // pred_region
        %p444 = scmp.lt.s32.totalorder %s27, 1
        %s445 = scalar_select %p444, %s27, 1
        %s446 = smul.addr %s445, 8
        %s447 = scalar_lea.vmem %s0, %s446
      $region20: #{encoder_forward.1} parent=15 // pred_fallthru
        _
      // Predicated region
      $region21: #{encoder_forward.1} parent=15 // pred_check
        %p448 = pneg %p78
      $region22: #{encoder_forward.1} parent=15 // pred_check_branch
        %450 = sbr.rel (%p448) target = $region24
      $region23: #{encoder_forward.1} parent=15 // pred_region
        %p451 = scmp.lt.s32.totalorder %s27, 1
        %s452 = scalar_select %p451, %s27, 1
        %s453 = scalar_lea.vmem %s1, %s452
      $region24: #{encoder_forward.1} parent=15 // pred_fallthru
        _
      // Predicated region
      $region25: #{encoder_forward.1} parent=15 // pred_check
        %p454 = pneg %p104
      $region26: #{encoder_forward.1} parent=15 // pred_check_branch
        %456 = sbr.rel (%p454) target = $region28
      $region27: #{encoder_forward.1} parent=15 // pred_region
        %p457 = scmp.lt.s32.totalorder %s28, 1
        %s458 = scalar_select %p457, %s28, 1
        %s459 = smul.addr %s458, 4
        %s460 = smul.addr %s459, 4
        %s461 = scalar_lea.vmem %s2, %s460
      $region28: #{encoder_forward.1} parent=15 // pred_fallthru
        _
      // Predicated region
      $region29: #{encoder_forward.1} parent=15 // pred_check
        %p462 = pneg %p130
      $region30: #{encoder_forward.1} parent=15 // pred_check_branch
        %464 = sbr.rel (%p462) target = $region32
      $region31: #{encoder_forward.1} parent=15 // pred_region
        %p465 = scmp.lt.s32.totalorder %s28, 1
        %s466 = scalar_select %p465, %s28, 1
        %s467 = scalar_lea.vmem %s3, %s466
      $region32: #{encoder_forward.1} parent=15 // pred_fallthru
        _
      // Predicated region
      $region33: #{encoder_forward.1} parent=15 // pred_check
        %p468 = pneg %p156
      $region34: #{encoder_forward.1} parent=15 // pred_check_branch
        %470 = sbr.rel (%p468) target = $region36
      $region35: #{encoder_forward.1} parent=15 // pred_region
        %p471 = scmp.lt.s32.totalorder %s28, 1
        %s472 = scalar_select %p471, %s28, 1
        %s473 = smul.addr %s472, 4
        %s474 = smul.addr %s473, 4
        %s475 = scalar_lea.vmem %s4, %s474
      $region36: #{encoder_forward.1} parent=15 // pred_fallthru
        _
      // Predicated region
      $region37: #{encoder_forward.1} parent=15 // pred_check
        %p476 = pneg %p182
      $region38: #{encoder_forward.1} parent=15 // pred_check_branch
        %478 = sbr.rel (%p476) target = $region40
      $region39: #{encoder_forward.1} parent=15 // pred_region
        %p479 = scmp.lt.s32.totalorder %s28, 1
        %s480 = scalar_select %p479, %s28, 1
        %s481 = scalar_lea.vmem %s5, %s480
      $region40: #{encoder_forward.1} parent=15 // pred_fallthru
        _
      // Predicated region
      $region41: #{encoder_forward.1} parent=15 // pred_check
        %p482 = pneg %p208
      $region42: #{encoder_forward.1} parent=15 // pred_check_branch
        %484 = sbr.rel (%p482) target = $region44
      $region43: #{encoder_forward.1} parent=15 // pred_region
        %p485 = scmp.lt.s32.totalorder %s28, 1
        %s486 = scalar_select %p485, %s28, 1
        %s487 = scalar_lea.vmem %s6, %s486
      $region44: #{encoder_forward.1} parent=15 // pred_fallthru
        _
      // Predicated region
      $region45: #{encoder_forward.1} parent=15 // pred_check
        %p488 = pneg %p234
      $region46: #{encoder_forward.1} parent=15 // pred_check_branch
        %490 = sbr.rel (%p488) target = $region48
      $region47: #{encoder_forward.1} parent=15 // pred_region
        %p491 = scmp.lt.s32.totalorder %s28, 1
        %s492 = scalar_select %p491, %s28, 1
        %s493 = scalar_lea.vmem %s7, %s492
      $region48: #{encoder_forward.1} parent=15 // pred_fallthru
        _
      // Predicated region
      $region49: #{encoder_forward.1} parent=15 // pred_check
        %p494 = pneg %p260
      $region50: #{encoder_forward.1} parent=15 // pred_check_branch
        %496 = sbr.rel (%p494) target = $region52
      $region51: #{encoder_forward.1} parent=15 // pred_region
        %p497 = scmp.lt.s32.totalorder %s28, 1
        %s498 = scalar_select %p497, %s28, 1
        %s499 = smul.addr %s498, 4
        %s500 = smul.addr %s499, 4
        %s501 = scalar_lea.vmem %s8, %s500
      $region52: #{encoder_forward.1} parent=15 // pred_fallthru
        _
      // Predicated region
      $region53: #{encoder_forward.1} parent=15 // pred_check
        %p502 = pneg %p286
      $region54: #{encoder_forward.1} parent=15 // pred_check_branch
        %504 = sbr.rel (%p502) target = $region56
      $region55: #{encoder_forward.1} parent=15 // pred_region
        %p505 = scmp.lt.s32.totalorder %s28, 1
        %s506 = scalar_select %p505, %s28, 1
        %s507 = scalar_lea.vmem %s9, %s506
      $region56: #{encoder_forward.1} parent=15 // pred_fallthru
        _
      // Predicated region
      $region57: #{encoder_forward.1} parent=15 // pred_check
        %p508 = pneg %p312
      $region58: #{encoder_forward.1} parent=15 // pred_check_branch
        %510 = sbr.rel (%p508) target = $region60
      $region59: #{encoder_forward.1} parent=15 // pred_region
        %p511 = scmp.lt.s32.totalorder %s28, 1
        %s512 = scalar_select %p511, %s28, 1
        %s513 = smul.addr %s512, 8
        %s514 = smul.addr %s513, 4
        %s515 = scalar_lea.vmem %s10, %s514
      $region60: #{encoder_forward.1} parent=15 // pred_fallthru
        _
      // Predicated region
      $region61: #{encoder_forward.1} parent=15 // pred_check
        %p516 = pneg %p338
      $region62: #{encoder_forward.1} parent=15 // pred_check_branch
        %518 = sbr.rel (%p516) target = $region64
      $region63: #{encoder_forward.1} parent=15 // pred_region
        %p519 = scmp.lt.s32.totalorder %s28, 1
        %s520 = scalar_select %p519, %s28, 1
        %s521 = scalar_lea.vmem %s11, %s520
      $region64: #{encoder_forward.1} parent=15 // pred_fallthru
        _
      // Predicated region
      $region65: #{encoder_forward.1} parent=15 // pred_check
        %p522 = pneg %p364
      $region66: #{encoder_forward.1} parent=15 // pred_check_branch
        %524 = sbr.rel (%p522) target = $region68
      $region67: #{encoder_forward.1} parent=15 // pred_region
        %p525 = scmp.lt.s32.totalorder %s28, 1
        %s526 = scalar_select %p525, %s28, 1
        %s527 = scalar_lea.vmem %s12, %s526
      $region68: #{encoder_forward.1} parent=15 // pred_fallthru
        _
      // Predicated region
      $region69: #{encoder_forward.1} parent=15 // pred_check
        %p528 = pneg %p390
      $region70: #{encoder_forward.1} parent=15 // pred_check_branch
        %530 = sbr.rel (%p528) target = $region72
      $region71: #{encoder_forward.1} parent=15 // pred_region
        %p531 = scmp.lt.s32.totalorder %s28, 1
        %s532 = scalar_select %p531, %s28, 1
        %s533 = scalar_lea.vmem %s13, %s532
      $region72: #{encoder_forward.1} parent=15 // pred_fallthru
        _
    $region16: #{encoder_forward.1} parent=5 // pred_fallthru
      _
    %p534 = scmp.le.s32.totalorder 1, %s20
    %p535 = scmp.lt.s32.totalorder %s20, 5
    %p536 = pnand %p534, %p535
    %p537 = pneg %p536
    // Predicated region
    $region73: #{encoder_forward.1} parent=5 // pred_check
      _
    $region74: #{encoder_forward.1} parent=5 // pred_check_branch
      %539 = sbr.rel (%p536) target = $region76
    $region75: #{encoder_forward.1} parent=5 // pred_region
      %s540 = ssub.s32 %s20, 1
      %p541 = scmp.lt.s32.totalorder %s29, 1
      %s542 = scalar_select %p541, %s29, 1
      %s543 = smul.addr %s542, 8
      %s544 = scalar_lea.vmem %s0, %s543
      %p545 = pneg %p58
      %p546 = pneg %p55
      %p547 = scmp.lt.s32.totalorder %s29, 1
      %s548 = scalar_select %p547, %s29, 1
      %s549 = scalar_lea.vmem %s1, %s548
      %p550 = pneg %p84
      %p551 = pneg %p81
      %p552 = scmp.lt.s32.totalorder %s30, 1
      %s553 = scalar_select %p552, %s30, 1
      %s554 = smul.addr %s553, 4
      %s555 = smul.addr %s554, 4
      %s556 = scalar_lea.vmem %s2, %s555
      %p557 = pneg %p110
      %p558 = pneg %p107
      %p559 = scmp.lt.s32.totalorder %s30, 1
      %s560 = scalar_select %p559, %s30, 1
      %s561 = scalar_lea.vmem %s3, %s560
      %p562 = pneg %p136
      %p563 = pneg %p133
      %p564 = scmp.lt.s32.totalorder %s30, 1
      %s565 = scalar_select %p564, %s30, 1
      %s566 = smul.addr %s565, 4
      %s567 = smul.addr %s566, 4
      %s568 = scalar_lea.vmem %s4, %s567
      %p569 = pneg %p162
      %p570 = pneg %p159
      %p571 = scmp.lt.s32.totalorder %s30, 1
      %s572 = scalar_select %p571, %s30, 1
      %s573 = scalar_lea.vmem %s5, %s572
      %p574 = pneg %p188
      %p575 = pneg %p185
      %p576 = scmp.lt.s32.totalorder %s30, 1
      %s577 = scalar_select %p576, %s30, 1
      %s578 = scalar_lea.vmem %s6, %s577
      %p579 = pneg %p214
      %p580 = pneg %p211
      %p581 = scmp.lt.s32.totalorder %s30, 1
      %s582 = scalar_select %p581, %s30, 1
      %s583 = scalar_lea.vmem %s7, %s582
      %p584 = pneg %p240
      %p585 = pneg %p237
      %p586 = scmp.lt.s32.totalorder %s30, 1
      %s587 = scalar_select %p586, %s30, 1
      %s588 = smul.addr %s587, 4
      %s589 = smul.addr %s588, 4
      %s590 = scalar_lea.vmem %s8, %s589
      %p591 = pneg %p266
      %p592 = pneg %p263
      %p593 = scmp.lt.s32.totalorder %s30, 1
      %s594 = scalar_select %p593, %s30, 1
      %s595 = scalar_lea.vmem %s9, %s594
      %p596 = pneg %p292
      %p597 = pneg %p289
      %p598 = scmp.lt.s32.totalorder %s30, 1
      %s599 = scalar_select %p598, %s30, 1
      %s600 = smul.addr %s599, 8
      %s601 = smul.addr %s600, 4
      %s602 = scalar_lea.vmem %s10, %s601
      %p603 = pneg %p318
      %p604 = pneg %p315
      %p605 = scmp.lt.s32.totalorder %s30, 1
      %s606 = scalar_select %p605, %s30, 1
      %s607 = scalar_lea.vmem %s11, %s606
      %p608 = pneg %p344
      %p609 = pneg %p341
      %p610 = scmp.lt.s32.totalorder %s30, 1
      %s611 = scalar_select %p610, %s30, 1
      %s612 = scalar_lea.vmem %s12, %s611
      %p613 = pneg %p370
      %p614 = pneg %p367
      %p615 = scmp.lt.s32.totalorder %s30, 1
      %s616 = scalar_select %p615, %s30, 1
      %s617 = scalar_lea.vmem %s13, %s616
      %p618 = pneg %p396
      %p619 = pneg %p393
      %p620 = pneg %p422
      %p621 = pneg %p419
      %p622 = scmp.lt.s32.totalorder %s29, 1
      %s623 = scalar_select %p622, %s29, 1
      %s624 = smul.addr %s623, 8
      %s625 = scalar_lea.vmem %s14, %s624
      %p626 = scmp.lt.s32.totalorder %s29, 1
      %s627 = scalar_select %p626, %s29, 1
      %s628 = smul.addr %s627, 8
      %s629 = scalar_lea.vmem %s0, %s628
      %p630 = scmp.lt.s32.totalorder %s29, 1
      %s631 = scalar_select %p630, %s29, 1
      %s632 = scalar_lea.vmem %s1, %s631
      %p633 = scmp.lt.s32.totalorder %s30, 1
      %s634 = scalar_select %p633, %s30, 1
      %s635 = smul.addr %s634, 4
      %s636 = smul.addr %s635, 4
      %s637 = scalar_lea.vmem %s2, %s636
      %p638 = scmp.lt.s32.totalorder %s30, 1
      %s639 = scalar_select %p638, %s30, 1
      %s640 = scalar_lea.vmem %s3, %s639
      %p641 = scmp.lt.s32.totalorder %s30, 1
      %s642 = scalar_select %p641, %s30, 1
      %s643 = smul.addr %s642, 4
      %s644 = smul.addr %s643, 4
      %s645 = scalar_lea.vmem %s4, %s644
      %p646 = scmp.lt.s32.totalorder %s30, 1
      %s647 = scalar_select %p646, %s30, 1
      %s648 = scalar_lea.vmem %s5, %s647
      %p649 = scmp.lt.s32.totalorder %s30, 1
      %s650 = scalar_select %p649, %s30, 1
      %s651 = scalar_lea.vmem %s6, %s650
      %p652 = scmp.lt.s32.totalorder %s30, 1
      %s653 = scalar_select %p652, %s30, 1
      %s654 = scalar_lea.vmem %s7, %s653
      %p655 = scmp.lt.s32.totalorder %s30, 1
      %s656 = scalar_select %p655, %s30, 1
      %s657 = smul.addr %s656, 4
      %s658 = smul.addr %s657, 4
      %s659 = scalar_lea.vmem %s8, %s658
      %p660 = scmp.lt.s32.totalorder %s30, 1
      %s661 = scalar_select %p660, %s30, 1
      %s662 = scalar_lea.vmem %s9, %s661
      %p663 = scmp.lt.s32.totalorder %s30, 1
      %s664 = scalar_select %p663, %s30, 1
      %s665 = smul.addr %s664, 8
      %s666 = smul.addr %s665, 4
      %s667 = scalar_lea.vmem %s10, %s666
      %p668 = scmp.lt.s32.totalorder %s30, 1
      %s669 = scalar_select %p668, %s30, 1
      %s670 = scalar_lea.vmem %s11, %s669
      %p671 = scmp.lt.s32.totalorder %s30, 1
      %s672 = scalar_select %p671, %s30, 1
      %s673 = scalar_lea.vmem %s12, %s672
      %p674 = scmp.lt.s32.totalorder %s30, 1
      %s675 = scalar_select %p674, %s30, 1
      %s676 = scalar_lea.vmem %s13, %s675
      %p677 = scmp.lt.s32.totalorder %s29, 1
      %s678 = scalar_select %p677, %s29, 1
      %s679 = smul.addr %s678, 8
      %s680 = scalar_lea.vmem %s14, %s679
      %p682 = scmp.eq.s32.totalorder %s30, 0
      // Predicated region
      $region77: #{encoder_forward.1} parent=75 // pred_check
        %p683 = pneg %p682
      $region78: #{encoder_forward.1} parent=75 // pred_check_branch
        %685 = sbr.rel (%p683) target = $region80
      $region79: #{encoder_forward.1} parent=75 // pred_region
        %v686 = vld [vmem:[%s629] sm:$0xff]
        %vm687 = vcmask 261120
        %688 = vst.msk [vmem:[#allocation2] sm:$0xff] %vm687, %v686
      $region80: #{encoder_forward.1} parent=75 // pred_fallthru
        _
      %v689 = vld [vmem:[#allocation2] sm:$0xff]
      %v690 = vld [vmem:[%s632] sm:$0x1]
      %v691 = vpack.c.bf16 %v689, %v689
      %v692 = vld [vmem:[%s637] sm:$0xf]
      %v693 = vld [vmem:[%s637 + $0x4] sm:$0xf]
      %v694 = vld [vmem:[%s637 + $0x8] sm:$0xf]
      %v695 = vld [vmem:[%s637 + $0xc] sm:$0xf]
      %v696 = vld [vmem:[%s640] sm:$0x1]
      %v698 = vlaneseq
      %v699 = vshrl.u32 %v698, 7
      %v700 = vsub.s32 0, %v699
      %v701 = vrot.slane %v696, %v700
      %v707 = vunpack.c.l.b16 %v692
      %v708 = vunpack.c.l.b16 %v693
      %v709 = vunpack.c.l.b16 %v694
      %v710 = vunpack.c.l.b16 %v695
      %v711 = vpack.c.b16 %v708, %v707
      %v712 = vpack.c.b16 %v710, %v709
      %vm715 = vcmask 261120
      %v717 = vsel %vm715, %v691, 0
      %719 = vmatprep.subr.bf16.mxu0 0
      %720 = vmatpush1.bf16.msra.mxu0 0
      %721 = vmatprep.subr.bf16.mxu0 0
      %722 = vmatpush1.bf16.msra.mxu0 0
      %723 = vmatprep.subr.bf16.mxu0 0
      %724 = vmatpush1.bf16.msra.mxu0 0
      %725 = vmatprep.subr.bf16.mxu0 0
      %726 = vmatpush1.bf16.msra.mxu0 0
      %727 = vmatprep.subr.bf16.mxu0 0
      %728 = vmatpush1.bf16.msra.mxu0 0
      %729 = vmatprep.subr.bf16.mxu0 0
      %730 = vmatpush1.bf16.msra.mxu0 0
      %731 = vmatprep.subr.bf16.mxu0 0
      %732 = vmatpush1.bf16.msra.mxu0 %v712
      %733 = vmatprep.subr.bf16.mxu0 0
      %734 = vmatpush1.bf16.msra.mxu0 %v711
      %735 = vmatprep.subr.bf16.mxu0 0
      %736 = vmatpush2.bf16.msra.mxu0 0
      %737 = vmatprep.subr.bf16.mxu0 0
      %738 = vmatpush2.bf16.msra.mxu0 0
      %739 = vmatprep.subr.bf16.mxu0 0
      %740 = vmatpush2.bf16.msra.mxu0 0
      %741 = vmatprep.subr.bf16.mxu0 0
      %742 = vmatpush2.bf16.msra.mxu0 0
      %743 = vmatprep.subr.bf16.mxu0 0
      %744 = vmatpush2.bf16.msra.mxu0 0
      %745 = vmatprep.subr.bf16.mxu0 0
      %746 = vmatpush2.bf16.msra.mxu0 0
      %747 = vmatprep.subr.bf16.mxu0 0
      %748 = vmatpush2.bf16.msra.mxu0 0
      %749 = vmatprep.subr.bf16.mxu0 0
      %750 = vmatpush2.bf16.msra.mxu0 0
      %751 = vmatprep.mubr.bf16.mxu0 0
      %752 = vmatmul.mubr.bf16.gmra.mxu0 %v717
      %v753 = vpop.f32.mrf.mxu0
      %v754 = vadd.f32 %v701, %v753
      %v755 = vpop.f32.mrf.mxu0
      %v756 = vpop.f32.mrf.mxu0
      %v757 = vpop.f32.mrf.mxu0
      %758 = vdwg.mxu0
      %v759 = vpack.c.bf16 %v754, %v754
      %v761 = vlaneseq
      %v762 = vshrl.u32 %v761, 7
      %v763 = vsub.s32 0, %v762
      %v764 = vrot.slane %v690, %v763
      %767 = vrot.lane.b32.xlu0 %v759, 96
      %v768 = vpop.permute.xlu0 %767
      %vm769 = vcmask 64512
      %v771 = vsel %vm769, %v759, 0
      %v774 = vsel %vm769, %v768, 0
      %776 = vmatprep.subr.bf16.mxu0 0
      %777 = vmatpush1.bf16.xpose.msra.mxu0 0
      %778 = vmatprep.subr.bf16.mxu0 0
      %779 = vmatpush1.bf16.xpose.msra.mxu0 0
      %780 = vmatprep.subr.bf16.mxu0 0
      %781 = vmatpush1.bf16.xpose.msra.mxu0 0
      %782 = vmatprep.subr.bf16.mxu0 0
      %783 = vmatpush1.bf16.xpose.msra.mxu0 0
      %784 = vmatprep.subr.bf16.mxu0 0
      %785 = vmatpush1.bf16.xpose.msra.mxu0 0
      %786 = vmatprep.subr.bf16.mxu0 0
      %787 = vmatpush1.bf16.xpose.msra.mxu0 0
      %788 = vmatprep.subr.bf16.mxu0 0
      %789 = vmatpush1.bf16.xpose.msra.mxu0 0
      %790 = vmatprep.subr.bf16.mxu0 0
      %791 = vmatpush1.bf16.xpose.msra.mxu0 %v774
      %792 = vmatprep.subr.bf16.mxu0 0
      %793 = vmatpush2.bf16.xpose.msra.mxu0 0
      %794 = vmatprep.subr.bf16.mxu0 0
      %795 = vmatpush2.bf16.xpose.msra.mxu0 0
      %796 = vmatprep.subr.bf16.mxu0 0
      %797 = vmatpush2.bf16.xpose.msra.mxu0 0
      %798 = vmatprep.subr.bf16.mxu0 0
      %799 = vmatpush2.bf16.xpose.msra.mxu0 0
      %800 = vmatprep.subr.bf16.mxu0 0
      %801 = vmatpush2.bf16.xpose.msra.mxu0 0
      %802 = vmatprep.subr.bf16.mxu0 0
      %803 = vmatpush2.bf16.xpose.msra.mxu0 0
      %804 = vmatprep.subr.bf16.mxu0 0
      %805 = vmatpush2.bf16.xpose.msra.mxu0 0
      %806 = vmatprep.subr.bf16.mxu0 0
      %807 = vmatpush2.bf16.xpose.msra.mxu0 0
      %808 = vmatprep.mubr.bf16.mxu0 0
      %809 = vmatmul.mubr.bf16.gmra.mxu0 %v771
      %v810 = vpop.f32.mrf.mxu0
      %v811 = vadd.f32 %v764, %v810
      %v812 = vpop.f32.mrf.mxu0
      %v813 = vpop.f32.mrf.mxu0
      %v814 = vpop.f32.mrf.mxu0
      %815 = vdwg.mxu0
      %v816 = vsel %vm769, %v811, -inf
      %817 = vmax.xlane.f32.xlu0 %v816
      %v818 = vpop.xlane.xlu0 %817
      %v819 = vsub.f32 %v811, %v818
      %v820 = vmul.f32 %v819, 1.442695
      %v821 = vpow.pop %v820
      %v822 = vsel %vm769, %v821, 0.0
      %823 = vadd.xlane.f32.xlu0 %v822
      %v824 = vpop.xlane.xlu0 %823
      %v825 = vrcp.pop %v824
      %v826 = vmul.f32 %v821, %v825
      %v827 = vpack.c.bf16 %v826, %v826
      %828 = vrot.lane.b32.xlu0 %v759, 64
      %v829 = vpop.permute.xlu0 %828
      %v831 = vsel %vm769, %v827, 0
      %vm833 = vcmask 1043456
      %v835 = vsel %vm833, %v829, 0
      %837 = vmatprep.subr.bf16.mxu0 0
      %838 = vmatpush1.bf16.msra.mxu0 0
      %839 = vmatprep.subr.bf16.mxu0 0
      %840 = vmatpush1.bf16.msra.mxu0 0
      %841 = vmatprep.subr.bf16.mxu0 0
      %842 = vmatpush1.bf16.msra.mxu0 0
      %843 = vmatprep.subr.bf16.mxu0 0
      %844 = vmatpush1.bf16.msra.mxu0 0
      %845 = vmatprep.subr.bf16.mxu0 0
      %846 = vmatpush1.bf16.msra.mxu0 0
      %847 = vmatprep.subr.bf16.mxu0 0
      %848 = vmatpush1.bf16.msra.mxu0 0
      %849 = vmatprep.subr.bf16.mxu0 0
      %850 = vmatpush1.bf16.msra.mxu0 0
      %851 = vmatprep.subr.bf16.mxu0 0
      %852 = vmatpush1.bf16.msra.mxu0 %v835
      %853 = vmatprep.subr.bf16.mxu0 0
      %854 = vmatpush2.bf16.msra.mxu0 0
      %855 = vmatprep.subr.bf16.mxu0 0
      %856 = vmatpush2.bf16.msra.mxu0 0
      %857 = vmatprep.subr.bf16.mxu0 0
      %858 = vmatpush2.bf16.msra.mxu0 0
      %859 = vmatprep.subr.bf16.mxu0 0
      %860 = vmatpush2.bf16.msra.mxu0 0
      %861 = vmatprep.subr.bf16.mxu0 0
      %862 = vmatpush2.bf16.msra.mxu0 0
      %863 = vmatprep.subr.bf16.mxu0 0
      %864 = vmatpush2.bf16.msra.mxu0 0
      %865 = vmatprep.subr.bf16.mxu0 0
      %866 = vmatpush2.bf16.msra.mxu0 0
      %867 = vmatprep.subr.bf16.mxu0 0
      %868 = vmatpush2.bf16.msra.mxu0 0
      %869 = vmatprep.mubr.bf16.mxu0 0
      %870 = vmatmul.mubr.bf16.gmra.mxu0 %v831
      %v871 = vpop.f32.mrf.mxu0
      %v872 = vadd.f32 0.0, %v871
      %v873 = vpop.f32.mrf.mxu0
      %v874 = vpop.f32.mrf.mxu0
      %v875 = vpop.f32.mrf.mxu0
      %876 = vdwg.mxu0
      %877 = vrot.lane.b32.xlu0 %v759, 120
      %v878 = vpop.permute.xlu0 %877
      %879 = vrot.lane.b32.xlu0 %v759, 88
      %v880 = vpop.permute.xlu0 %879
      %v882 = vsel %vm769, %v878, 0
      %v885 = vsel %vm769, %v880, 0
      %887 = vmatprep.subr.bf16.mxu0 0
      %888 = vmatpush1.bf16.xpose.msra.mxu0 0
      %889 = vmatprep.subr.bf16.mxu0 0
      %890 = vmatpush1.bf16.xpose.msra.mxu0 0
      %891 = vmatprep.subr.bf16.mxu0 0
      %892 = vmatpush1.bf16.xpose.msra.mxu0 0
      %893 = vmatprep.subr.bf16.mxu0 0
      %894 = vmatpush1.bf16.xpose.msra.mxu0 0
      %895 = vmatprep.subr.bf16.mxu0 0
      %896 = vmatpush1.bf16.xpose.msra.mxu0 0
      %897 = vmatprep.subr.bf16.mxu0 0
      %898 = vmatpush1.bf16.xpose.msra.mxu0 0
      %899 = vmatprep.subr.bf16.mxu0 0
      %900 = vmatpush1.bf16.xpose.msra.mxu0 0
      %901 = vmatprep.subr.bf16.mxu0 0
      %902 = vmatpush1.bf16.xpose.msra.mxu0 %v885
      %903 = vmatprep.subr.bf16.mxu0 0
      %904 = vmatpush2.bf16.xpose.msra.mxu0 0
      %905 = vmatprep.subr.bf16.mxu0 0
      %906 = vmatpush2.bf16.xpose.msra.mxu0 0
      %907 = vmatprep.subr.bf16.mxu0 0
      %908 = vmatpush2.bf16.xpose.msra.mxu0 0
      %909 = vmatprep.subr.bf16.mxu0 0
      %910 = vmatpush2.bf16.xpose.msra.mxu0 0
      %911 = vmatprep.subr.bf16.mxu0 0
      %912 = vmatpush2.bf16.xpose.msra.mxu0 0
      %913 = vmatprep.subr.bf16.mxu0 0
      %914 = vmatpush2.bf16.xpose.msra.mxu0 0
      %915 = vmatprep.subr.bf16.mxu0 0
      %916 = vmatpush2.bf16.xpose.msra.mxu0 0
      %917 = vmatprep.subr.bf16.mxu0 0
      %918 = vmatpush2.bf16.xpose.msra.mxu0 0
      %919 = vmatprep.mubr.bf16.mxu0 0
      %920 = vmatmul.mubr.bf16.gmra.mxu0 %v882
      %v921 = vpop.f32.mrf.mxu0
      %v922 = vadd.f32 %v764, %v921
      %v923 = vpop.f32.mrf.mxu0
      %v924 = vpop.f32.mrf.mxu0
      %v925 = vpop.f32.mrf.mxu0
      %926 = vdwg.mxu0
      %v927 = vsel %vm769, %v922, -inf
      %928 = vmax.xlane.f32.xlu0 %v927
      %v929 = vpop.xlane.xlu0 %928
      %v930 = vsub.f32 %v922, %v929
      %v931 = vmul.f32 %v930, 1.442695
      %v932 = vpow.pop %v931
      %v933 = vsel %vm769, %v932, 0.0
      %934 = vadd.xlane.f32.xlu0 %v933
      %v935 = vpop.xlane.xlu0 %934
      %v936 = vrcp.pop %v935
      %v937 = vmul.f32 %v932, %v936
      %v938 = vpack.c.bf16 %v937, %v937
      %939 = vrot.lane.b32.xlu0 %v759, 56
      %v940 = vpop.permute.xlu0 %939
      %v942 = vsel %vm769, %v938, 0
      %v945 = vsel %vm833, %v940, 0
      %947 = vmatprep.subr.bf16.mxu0 0
      %948 = vmatpush1.bf16.msra.mxu0 0
      %949 = vmatprep.subr.bf16.mxu0 0
      %950 = vmatpush1.bf16.msra.mxu0 0
      %951 = vmatprep.subr.bf16.mxu0 0
      %952 = vmatpush1.bf16.msra.mxu0 0
      %953 = vmatprep.subr.bf16.mxu0 0
      %954 = vmatpush1.bf16.msra.mxu0 0
      %955 = vmatprep.subr.bf16.mxu0 0
      %956 = vmatpush1.bf16.msra.mxu0 0
      %957 = vmatprep.subr.bf16.mxu0 0
      %958 = vmatpush1.bf16.msra.mxu0 0
      %959 = vmatprep.subr.bf16.mxu0 0
      %960 = vmatpush1.bf16.msra.mxu0 0
      %961 = vmatprep.subr.bf16.mxu0 0
      %962 = vmatpush1.bf16.msra.mxu0 %v945
      %963 = vmatprep.subr.bf16.mxu0 0
      %964 = vmatpush2.bf16.msra.mxu0 0
      %965 = vmatprep.subr.bf16.mxu0 0
      %966 = vmatpush2.bf16.msra.mxu0 0
      %967 = vmatprep.subr.bf16.mxu0 0
      %968 = vmatpush2.bf16.msra.mxu0 0
      %969 = vmatprep.subr.bf16.mxu0 0
      %970 = vmatpush2.bf16.msra.mxu0 0
      %971 = vmatprep.subr.bf16.mxu0 0
      %972 = vmatpush2.bf16.msra.mxu0 0
      %973 = vmatprep.subr.bf16.mxu0 0
      %974 = vmatpush2.bf16.msra.mxu0 0
      %975 = vmatprep.subr.bf16.mxu0 0
      %976 = vmatpush2.bf16.msra.mxu0 0
      %977 = vmatprep.subr.bf16.mxu0 0
      %978 = vmatpush2.bf16.msra.mxu0 0
      %979 = vmatprep.mubr.bf16.mxu0 0
      %980 = vmatmul.mubr.bf16.gmra.mxu0 %v942
      %v981 = vpop.f32.mrf.mxu0
      %v982 = vadd.f32 0.0, %v981
      %v983 = vpop.f32.mrf.mxu0
      %v984 = vpop.f32.mrf.mxu0
      %v985 = vpop.f32.mrf.mxu0
      %986 = vdwg.mxu0
      %987 = vrot.lane.b32.xlu0 %v759, 112
      %v988 = vpop.permute.xlu0 %987
      %989 = vrot.lane.b32.xlu0 %v759, 80
      %v990 = vpop.permute.xlu0 %989
      %v992 = vsel %vm769, %v988, 0
      %v995 = vsel %vm769, %v990, 0
      %997 = vmatprep.subr.bf16.mxu0 0
      %998 = vmatpush1.bf16.xpose.msra.mxu0 0
      %999 = vmatprep.subr.bf16.mxu0 0
      %1000 = vmatpush1.bf16.xpose.msra.mxu0 0
      %1001 = vmatprep.subr.bf16.mxu0 0
      %1002 = vmatpush1.bf16.xpose.msra.mxu0 0
      %1003 = vmatprep.subr.bf16.mxu0 0
      %1004 = vmatpush1.bf16.xpose.msra.mxu0 0
      %1005 = vmatprep.subr.bf16.mxu0 0
      %1006 = vmatpush1.bf16.xpose.msra.mxu0 0
      %1007 = vmatprep.subr.bf16.mxu0 0
      %1008 = vmatpush1.bf16.xpose.msra.mxu0 0
      %1009 = vmatprep.subr.bf16.mxu0 0
      %1010 = vmatpush1.bf16.xpose.msra.mxu0 0
      %1011 = vmatprep.subr.bf16.mxu0 0
      %1012 = vmatpush1.bf16.xpose.msra.mxu0 %v995
      %1013 = vmatprep.subr.bf16.mxu0 0
      %1014 = vmatpush2.bf16.xpose.msra.mxu0 0
      %1015 = vmatprep.subr.bf16.mxu0 0
      %1016 = vmatpush2.bf16.xpose.msra.mxu0 0
      %1017 = vmatprep.subr.bf16.mxu0 0
      %1018 = vmatpush2.bf16.xpose.msra.mxu0 0
      %1019 = vmatprep.subr.bf16.mxu0 0
      %1020 = vmatpush2.bf16.xpose.msra.mxu0 0
      %1021 = vmatprep.subr.bf16.mxu0 0
      %1022 = vmatpush2.bf16.xpose.msra.mxu0 0
      %1023 = vmatprep.subr.bf16.mxu0 0
      %1024 = vmatpush2.bf16.xpose.msra.mxu0 0
      %1025 = vmatprep.subr.bf16.mxu0 0
      %1026 = vmatpush2.bf16.xpose.msra.mxu0 0
      %1027 = vmatprep.subr.bf16.mxu0 0
      %1028 = vmatpush2.bf16.xpose.msra.mxu0 0
      %1029 = vmatprep.mubr.bf16.mxu0 0
      %1030 = vmatmul.mubr.bf16.gmra.mxu0 %v992
      %v1031 = vpop.f32.mrf.mxu0
      %v1032 = vadd.f32 %v764, %v1031
      %v1033 = vpop.f32.mrf.mxu0
      %v1034 = vpop.f32.mrf.mxu0
      %v1035 = vpop.f32.mrf.mxu0
      %1036 = vdwg.mxu0
      %v1037 = vsel %vm769, %v1032, -inf
      %1038 = vmax.xlane.f32.xlu0 %v1037
      %v1039 = vpop.xlane.xlu0 %1038
      %v1040 = vsub.f32 %v1032, %v1039
      %v1041 = vmul.f32 %v1040, 1.442695
      %v1042 = vpow.pop %v1041
      %v1043 = vsel %vm769, %v1042, 0.0
      %1044 = vadd.xlane.f32.xlu0 %v1043
      %v1045 = vpop.xlane.xlu0 %1044
      %v1046 = vrcp.pop %v1045
      %v1047 = vmul.f32 %v1042, %v1046
      %v1048 = vpack.c.bf16 %v1047, %v1047
      %1049 = vrot.lane.b32.xlu0 %v759, 48
      %v1050 = vpop.permute.xlu0 %1049
      %v1052 = vsel %vm769, %v1048, 0
      %v1055 = vsel %vm833, %v1050, 0
      %1057 = vmatprep.subr.bf16.mxu0 0
      %1058 = vmatpush1.bf16.msra.mxu0 0
      %1059 = vmatprep.subr.bf16.mxu0 0
      %1060 = vmatpush1.bf16.msra.mxu0 0
      %1061 = vmatprep.subr.bf16.mxu0 0
      %1062 = vmatpush1.bf16.msra.mxu0 0
      %1063 = vmatprep.subr.bf16.mxu0 0
      %1064 = vmatpush1.bf16.msra.mxu0 0
      %1065 = vmatprep.subr.bf16.mxu0 0
      %1066 = vmatpush1.bf16.msra.mxu0 0
      %1067 = vmatprep.subr.bf16.mxu0 0
      %1068 = vmatpush1.bf16.msra.mxu0 0
      %1069 = vmatprep.subr.bf16.mxu0 0
      %1070 = vmatpush1.bf16.msra.mxu0 0
      %1071 = vmatprep.subr.bf16.mxu0 0
      %1072 = vmatpush1.bf16.msra.mxu0 %v1055
      %1073 = vmatprep.subr.bf16.mxu0 0
      %1074 = vmatpush2.bf16.msra.mxu0 0
      %1075 = vmatprep.subr.bf16.mxu0 0
      %1076 = vmatpush2.bf16.msra.mxu0 0
      %1077 = vmatprep.subr.bf16.mxu0 0
      %1078 = vmatpush2.bf16.msra.mxu0 0
      %1079 = vmatprep.subr.bf16.mxu0 0
      %1080 = vmatpush2.bf16.msra.mxu0 0
      %1081 = vmatprep.subr.bf16.mxu0 0
      %1082 = vmatpush2.bf16.msra.mxu0 0
      %1083 = vmatprep.subr.bf16.mxu0 0
      %1084 = vmatpush2.bf16.msra.mxu0 0
      %1085 = vmatprep.subr.bf16.mxu0 0
      %1086 = vmatpush2.bf16.msra.mxu0 0
      %1087 = vmatprep.subr.bf16.mxu0 0
      %1088 = vmatpush2.bf16.msra.mxu0 0
      %1089 = vmatprep.mubr.bf16.mxu0 0
      %1090 = vmatmul.mubr.bf16.gmra.mxu0 %v1052
      %v1091 = vpop.f32.mrf.mxu0
      %v1092 = vadd.f32 0.0, %v1091
      %v1093 = vpop.f32.mrf.mxu0
      %v1094 = vpop.f32.mrf.mxu0
      %v1095 = vpop.f32.mrf.mxu0
      %1096 = vdwg.mxu0
      %1097 = vrot.lane.b32.xlu0 %v759, 104
      %v1098 = vpop.permute.xlu0 %1097
      %1099 = vrot.lane.b32.xlu0 %v759, 72
      %v1100 = vpop.permute.xlu0 %1099
      %v1102 = vsel %vm769, %v1098, 0
      %v1105 = vsel %vm769, %v1100, 0
      %1107 = vmatprep.subr.bf16.mxu0 0
      %1108 = vmatpush1.bf16.xpose.msra.mxu0 0
      %1109 = vmatprep.subr.bf16.mxu0 0
      %1110 = vmatpush1.bf16.xpose.msra.mxu0 0
      %1111 = vmatprep.subr.bf16.mxu0 0
      %1112 = vmatpush1.bf16.xpose.msra.mxu0 0
      %1113 = vmatprep.subr.bf16.mxu0 0
      %1114 = vmatpush1.bf16.xpose.msra.mxu0 0
      %1115 = vmatprep.subr.bf16.mxu0 0
      %1116 = vmatpush1.bf16.xpose.msra.mxu0 0
      %1117 = vmatprep.subr.bf16.mxu0 0
      %1118 = vmatpush1.bf16.xpose.msra.mxu0 0
      %1119 = vmatprep.subr.bf16.mxu0 0
      %1120 = vmatpush1.bf16.xpose.msra.mxu0 0
      %1121 = vmatprep.subr.bf16.mxu0 0
      %1122 = vmatpush1.bf16.xpose.msra.mxu0 %v1105
      %1123 = vmatprep.subr.bf16.mxu0 0
      %1124 = vmatpush2.bf16.xpose.msra.mxu0 0
      %1125 = vmatprep.subr.bf16.mxu0 0
      %1126 = vmatpush2.bf16.xpose.msra.mxu0 0
      %1127 = vmatprep.subr.bf16.mxu0 0
      %1128 = vmatpush2.bf16.xpose.msra.mxu0 0
      %1129 = vmatprep.subr.bf16.mxu0 0
      %1130 = vmatpush2.bf16.xpose.msra.mxu0 0
      %1131 = vmatprep.subr.bf16.mxu0 0
      %1132 = vmatpush2.bf16.xpose.msra.mxu0 0
      %1133 = vmatprep.subr.bf16.mxu0 0
      %1134 = vmatpush2.bf16.xpose.msra.mxu0 0
      %1135 = vmatprep.subr.bf16.mxu0 0
      %1136 = vmatpush2.bf16.xpose.msra.mxu0 0
      %1137 = vmatprep.subr.bf16.mxu0 0
      %1138 = vmatpush2.bf16.xpose.msra.mxu0 0
      %1139 = vmatprep.mubr.bf16.mxu0 0
      %1140 = vmatmul.mubr.bf16.gmra.mxu0 %v1102
      %v1141 = vpop.f32.mrf.mxu0
      %v1142 = vadd.f32 %v764, %v1141
      %v1143 = vpop.f32.mrf.mxu0
      %v1144 = vpop.f32.mrf.mxu0
      %v1145 = vpop.f32.mrf.mxu0
      %1146 = vdwg.mxu0
      %v1147 = vsel %vm769, %v1142, -inf
      %1148 = vmax.xlane.f32.xlu0 %v1147
      %v1149 = vpop.xlane.xlu0 %1148
      %v1150 = vsub.f32 %v1142, %v1149
      %v1151 = vmul.f32 %v1150, 1.442695
      %v1152 = vpow.pop %v1151
      %v1153 = vsel %vm769, %v1152, 0.0
      %1154 = vadd.xlane.f32.xlu0 %v1153
      %v1155 = vpop.xlane.xlu0 %1154
      %v1156 = vrcp.pop %v1155
      %v1157 = vmul.f32 %v1152, %v1156
      %v1158 = vpack.c.bf16 %v1157, %v1157
      %1159 = vrot.lane.b32.xlu0 %v759, 40
      %v1160 = vpop.permute.xlu0 %1159
      %v1162 = vsel %vm769, %v1158, 0
      %v1165 = vsel %vm833, %v1160, 0
      %1167 = vmatprep.subr.bf16.mxu0 0
      %1168 = vmatpush1.bf16.msra.mxu0 0
      %1169 = vmatprep.subr.bf16.mxu0 0
      %1170 = vmatpush1.bf16.msra.mxu0 0
      %1171 = vmatprep.subr.bf16.mxu0 0
      %1172 = vmatpush1.bf16.msra.mxu0 0
      %1173 = vmatprep.subr.bf16.mxu0 0
      %1174 = vmatpush1.bf16.msra.mxu0 0
      %1175 = vmatprep.subr.bf16.mxu0 0
      %1176 = vmatpush1.bf16.msra.mxu0 0
      %1177 = vmatprep.subr.bf16.mxu0 0
      %1178 = vmatpush1.bf16.msra.mxu0 0
      %1179 = vmatprep.subr.bf16.mxu0 0
      %1180 = vmatpush1.bf16.msra.mxu0 0
      %1181 = vmatprep.subr.bf16.mxu0 0
      %1182 = vmatpush1.bf16.msra.mxu0 %v1165
      %1183 = vmatprep.subr.bf16.mxu0 0
      %1184 = vmatpush2.bf16.msra.mxu0 0
      %1185 = vmatprep.subr.bf16.mxu0 0
      %1186 = vmatpush2.bf16.msra.mxu0 0
      %1187 = vmatprep.subr.bf16.mxu0 0
      %1188 = vmatpush2.bf16.msra.mxu0 0
      %1189 = vmatprep.subr.bf16.mxu0 0
      %1190 = vmatpush2.bf16.msra.mxu0 0
      %1191 = vmatprep.subr.bf16.mxu0 0
      %1192 = vmatpush2.bf16.msra.mxu0 0
      %1193 = vmatprep.subr.bf16.mxu0 0
      %1194 = vmatpush2.bf16.msra.mxu0 0
      %1195 = vmatprep.subr.bf16.mxu0 0
      %1196 = vmatpush2.bf16.msra.mxu0 0
      %1197 = vmatprep.subr.bf16.mxu0 0
      %1198 = vmatpush2.bf16.msra.mxu0 0
      %1199 = vmatprep.mubr.bf16.mxu0 0
      %1200 = vmatmul.mubr.bf16.gmra.mxu0 %v1162
      %v1201 = vpop.f32.mrf.mxu0
      %v1202 = vadd.f32 0.0, %v1201
      %v1203 = vpop.f32.mrf.mxu0
      %v1204 = vpop.f32.mrf.mxu0
      %v1205 = vpop.f32.mrf.mxu0
      %1206 = vdwg.mxu0
      %1208 = vrot.lane.b32.xlu0 %v982, 8
      %v1209 = vpop.permute.xlu0 %1208
      %1212 = vrot.lane.b32.xlu0 %v1092, 16
      %v1213 = vpop.permute.xlu0 %1212
      %1216 = vrot.lane.b32.xlu0 %v1202, 24
      %v1217 = vpop.permute.xlu0 %1216
      %v1219 = vsel %vm769, %v872, %v1209
      %vm1220 = vcmask 130048
      %v1221 = vsel %vm1220, %v1219, %v1213
      %vm1222 = vcmask 195584
      %v1223 = vsel %vm1222, %v1221, %v1217
      %v1224 = vpack.c.bf16 %v1223, %v1223
      %v1225 = vld [vmem:[%s645] sm:$0xf]
      %v1226 = vld [vmem:[%s645 + $0x4] sm:$0xf]
      %v1227 = vld [vmem:[%s645 + $0x8] sm:$0xf]
      %v1228 = vld [vmem:[%s645 + $0xc] sm:$0xf]
      %v1229 = vld [vmem:[%s648] sm:$0x1]
      %v1231 = vlaneseq
      %v1232 = vshrl.u32 %v1231, 7
      %v1233 = vsub.s32 0, %v1232
      %v1234 = vrot.slane %v1229, %v1233
      %v1240 = vunpack.c.l.b16 %v1225
      %v1241 = vunpack.c.l.b16 %v1226
      %v1242 = vunpack.c.l.b16 %v1227
      %v1243 = vunpack.c.l.b16 %v1228
      %v1244 = vpack.c.b16 %v1241, %v1240
      %v1245 = vpack.c.b16 %v1243, %v1242
      %v1249 = vsel %vm715, %v1224, 0
      %1251 = vmatprep.subr.bf16.mxu0 0
      %1252 = vmatpush1.bf16.msra.mxu0 0
      %1253 = vmatprep.subr.bf16.mxu0 0
      %1254 = vmatpush1.bf16.msra.mxu0 0
      %1255 = vmatprep.subr.bf16.mxu0 0
      %1256 = vmatpush1.bf16.msra.mxu0 0
      %1257 = vmatprep.subr.bf16.mxu0 0
      %1258 = vmatpush1.bf16.msra.mxu0 0
      %1259 = vmatprep.subr.bf16.mxu0 0
      %1260 = vmatpush1.bf16.msra.mxu0 0
      %1261 = vmatprep.subr.bf16.mxu0 0
      %1262 = vmatpush1.bf16.msra.mxu0 0
      %1263 = vmatprep.subr.bf16.mxu0 0
      %1264 = vmatpush1.bf16.msra.mxu0 %v1245
      %1265 = vmatprep.subr.bf16.mxu0 0
      %1266 = vmatpush1.bf16.msra.mxu0 %v1244
      %1267 = vmatprep.subr.bf16.mxu0 0
      %1268 = vmatpush2.bf16.msra.mxu0 0
      %1269 = vmatprep.subr.bf16.mxu0 0
      %1270 = vmatpush2.bf16.msra.mxu0 0
      %1271 = vmatprep.subr.bf16.mxu0 0
      %1272 = vmatpush2.bf16.msra.mxu0 0
      %1273 = vmatprep.subr.bf16.mxu0 0
      %1274 = vmatpush2.bf16.msra.mxu0 0
      %1275 = vmatprep.subr.bf16.mxu0 0
      %1276 = vmatpush2.bf16.msra.mxu0 0
      %1277 = vmatprep.subr.bf16.mxu0 0
      %1278 = vmatpush2.bf16.msra.mxu0 0
      %1279 = vmatprep.subr.bf16.mxu0 0
      %1280 = vmatpush2.bf16.msra.mxu0 0
      %1281 = vmatprep.subr.bf16.mxu0 0
      %1282 = vmatpush2.bf16.msra.mxu0 0
      %1283 = vmatprep.mubr.bf16.mxu0 0
      %1284 = vmatmul.mubr.bf16.gmra.mxu0 %v1249
      %v1285 = vpop.f32.mrf.mxu0
      %v1286 = vadd.f32 %v1234, %v1285
      %v1287 = vpop.f32.mrf.mxu0
      %v1288 = vpop.f32.mrf.mxu0
      %v1289 = vpop.f32.mrf.mxu0
      %1290 = vdwg.mxu0
      %v1291 = vadd.f32 %v689, %v1286
      %v1292 = vsel %vm715, %v1291, 0.0
      %1293 = vadd.xlane.f32.xlu0 %v1292
      %v1294 = vpop.xlane.xlu0 %1293
      %v1295 = vrcp.pop 32.0
      %v1296 = vmul.f32 %v1294, %v1295
      %v1297 = vsub.f32 %v1291, %v1296
      %v1298 = vmul.f32 %v1297, %v1297
      %v1299 = vsel %vm715, %v1298, 0.0
      %1300 = vadd.xlane.f32.xlu0 %v1299
      %v1301 = vpop.xlane.xlu0 %1300
      %v1302 = vmul.f32 %v1301, %v1295
      %v1303 = vadd.f32 %v1302, 1e-05
      %v1304 = vrsqrt.pop %v1303
      %v1305 = vmul.f32 %v1297, %v1304
      %v1306 = vld [vmem:[%s651] sm:$0x1]
      %v1308 = vlaneseq
      %v1309 = vshrl.u32 %v1308, 7
      %v1310 = vsub.s32 0, %v1309
      %v1311 = vrot.slane %v1306, %v1310
      %v1313 = vmul.f32 %v1305, %v1311
      %v1314 = vld [vmem:[%s654] sm:$0x1]
      %v1316 = vlaneseq
      %v1317 = vshrl.u32 %v1316, 7
      %v1318 = vsub.s32 0, %v1317
      %v1319 = vrot.slane %v1314, %v1318
      %v1321 = vadd.f32 %v1313, %v1319
      %v1322 = vpack.c.bf16 %v1321, %v1321
      %v1323 = vld [vmem:[%s659] sm:$0xf]
      %v1324 = vld [vmem:[%s659 + $0x4] sm:$0xf]
      %v1325 = vld [vmem:[%s659 + $0x8] sm:$0xf]
      %v1326 = vld [vmem:[%s659 + $0xc] sm:$0xf]
      %v1327 = vld [vmem:[%s662] sm:$0x1]
      %v1329 = vlaneseq
      %v1330 = vshrl.u32 %v1329, 7
      %v1331 = vsub.s32 0, %v1330
      %v1332 = vrot.slane %v1327, %v1331
      %v1338 = vunpack.c.l.b16 %v1323
      %v1339 = vunpack.c.l.b16 %v1324
      %v1340 = vunpack.c.l.b16 %v1325
      %v1341 = vunpack.c.l.b16 %v1326
      %v1342 = vpack.c.b16 %v1339, %v1338
      %v1343 = vpack.c.b16 %v1341, %v1340
      %v1347 = vsel %vm715, %v1322, 0
      %1349 = vmatprep.subr.bf16.mxu0 0
      %1350 = vmatpush1.bf16.msra.mxu0 0
      %1351 = vmatprep.subr.bf16.mxu0 0
      %1352 = vmatpush1.bf16.msra.mxu0 0
      %1353 = vmatprep.subr.bf16.mxu0 0
      %1354 = vmatpush1.bf16.msra.mxu0 0
      %1355 = vmatprep.subr.bf16.mxu0 0
      %1356 = vmatpush1.bf16.msra.mxu0 0
      %1357 = vmatprep.subr.bf16.mxu0 0
      %1358 = vmatpush1.bf16.msra.mxu0 0
      %1359 = vmatprep.subr.bf16.mxu0 0
      %1360 = vmatpush1.bf16.msra.mxu0 0
      %1361 = vmatprep.subr.bf16.mxu0 0
      %1362 = vmatpush1.bf16.msra.mxu0 %v1343
      %1363 = vmatprep.subr.bf16.mxu0 0
      %1364 = vmatpush1.bf16.msra.mxu0 %v1342
      %1365 = vmatprep.subr.bf16.mxu0 0
      %1366 = vmatpush2.bf16.msra.mxu0 0
      %1367 = vmatprep.subr.bf16.mxu0 0
      %1368 = vmatpush2.bf16.msra.mxu0 0
      %1369 = vmatprep.subr.bf16.mxu0 0
      %1370 = vmatpush2.bf16.msra.mxu0 0
      %1371 = vmatprep.subr.bf16.mxu0 0
      %1372 = vmatpush2.bf16.msra.mxu0 0
      %1373 = vmatprep.subr.bf16.mxu0 0
      %1374 = vmatpush2.bf16.msra.mxu0 0
      %1375 = vmatprep.subr.bf16.mxu0 0
      %1376 = vmatpush2.bf16.msra.mxu0 0
      %1377 = vmatprep.subr.bf16.mxu0 0
      %1378 = vmatpush2.bf16.msra.mxu0 0
      %1379 = vmatprep.subr.bf16.mxu0 0
      %1380 = vmatpush2.bf16.msra.mxu0 0
      %1381 = vmatprep.mubr.bf16.mxu0 0
      %1382 = vmatmul.mubr.bf16.gmra.mxu0 %v1347
      %v1383 = vpop.f32.mrf.mxu0
      %v1384 = vadd.f32 %v1332, %v1383
      %v1385 = vpop.f32.mrf.mxu0
      %v1386 = vpop.f32.mrf.mxu0
      %v1387 = vpop.f32.mrf.mxu0
      %1388 = vdwg.mxu0
      %v1389 = vmax.f32 %v1384, 0.0
      %v1390 = vpack.c.bf16 %v1389, %v1389
      %v1391 = vld [vmem:[%s667] sm:$0xf]
      %v1392 = vld [vmem:[%s667 + $0x4] sm:$0xf]
      %v1393 = vld [vmem:[%s667 + $0x8] sm:$0xf]
      %v1394 = vld [vmem:[%s667 + $0xc] sm:$0xf]
      %v1395 = vld [vmem:[%s667 + $0x10] sm:$0xf]
      %v1396 = vld [vmem:[%s667 + $0x14] sm:$0xf]
      %v1397 = vld [vmem:[%s667 + $0x18] sm:$0xf]
      %v1398 = vld [vmem:[%s667 + $0x1c] sm:$0xf]
      %v1399 = vld [vmem:[%s670] sm:$0x1]
      %v1401 = vlaneseq
      %v1402 = vshrl.u32 %v1401, 7
      %v1403 = vsub.s32 0, %v1402
      %v1404 = vrot.slane %v1399, %v1403
      %v1414 = vunpack.c.l.b16 %v1391
      %v1415 = vunpack.c.l.b16 %v1392
      %v1416 = vunpack.c.l.b16 %v1393
      %v1417 = vunpack.c.l.b16 %v1394
      %v1418 = vunpack.c.l.b16 %v1395
      %v1419 = vunpack.c.l.b16 %v1396
      %v1420 = vunpack.c.l.b16 %v1397
      %v1421 = vunpack.c.l.b16 %v1398
      %v1422 = vpack.c.b16 %v1415, %v1414
      %v1423 = vpack.c.b16 %v1417, %v1416
      %v1424 = vpack.c.b16 %v1419, %v1418
      %v1425 = vpack.c.b16 %v1421, %v1420
      %vm1430 = vcmask 523264
      %v1432 = vsel %vm1430, %v1390, 0
      %1434 = vmatprep.subr.bf16.mxu0 0
      %1435 = vmatpush1.bf16.msra.mxu0 0
      %1436 = vmatprep.subr.bf16.mxu0 0
      %1437 = vmatpush1.bf16.msra.mxu0 0
      %1438 = vmatprep.subr.bf16.mxu0 0
      %1439 = vmatpush1.bf16.msra.mxu0 0
      %1440 = vmatprep.subr.bf16.mxu0 0
      %1441 = vmatpush1.bf16.msra.mxu0 0
      %1442 = vmatprep.subr.bf16.mxu0 0
      %1443 = vmatpush1.bf16.msra.mxu0 %v1425
      %1444 = vmatprep.subr.bf16.mxu0 0
      %1445 = vmatpush1.bf16.msra.mxu0 %v1424
      %1446 = vmatprep.subr.bf16.mxu0 0
      %1447 = vmatpush1.bf16.msra.mxu0 %v1423
      %1448 = vmatprep.subr.bf16.mxu0 0
      %1449 = vmatpush1.bf16.msra.mxu0 %v1422
      %1450 = vmatprep.subr.bf16.mxu0 0
      %1451 = vmatpush2.bf16.msra.mxu0 0
      %1452 = vmatprep.subr.bf16.mxu0 0
      %1453 = vmatpush2.bf16.msra.mxu0 0
      %1454 = vmatprep.subr.bf16.mxu0 0
      %1455 = vmatpush2.bf16.msra.mxu0 0
      %1456 = vmatprep.subr.bf16.mxu0 0
      %1457 = vmatpush2.bf16.msra.mxu0 0
      %1458 = vmatprep.subr.bf16.mxu0 0
      %1459 = vmatpush2.bf16.msra.mxu0 0
      %1460 = vmatprep.subr.bf16.mxu0 0
      %1461 = vmatpush2.bf16.msra.mxu0 0
      %1462 = vmatprep.subr.bf16.mxu0 0
      %1463 = vmatpush2.bf16.msra.mxu0 0
      %1464 = vmatprep.subr.bf16.mxu0 0
      %1465 = vmatpush2.bf16.msra.mxu0 0
      %1466 = vmatprep.mubr.bf16.mxu0 0
      %1467 = vmatmul.mubr.bf16.gmra.mxu0 %v1432
      %v1468 = vpop.f32.mrf.mxu0
      %v1469 = vadd.f32 %v1404, %v1468
      %v1470 = vpop.f32.mrf.mxu0
      %v1471 = vpop.f32.mrf.mxu0
      %v1472 = vpop.f32.mrf.mxu0
      %1473 = vdwg.mxu0
      %v1474 = vadd.f32 %v1321, %v1469
      %v1475 = vsel %vm715, %v1474, 0.0
      %1476 = vadd.xlane.f32.xlu0 %v1475
      %v1477 = vpop.xlane.xlu0 %1476
      %v1478 = vmul.f32 %v1477, %v1295
      %v1479 = vsub.f32 %v1474, %v1478
      %v1480 = vmul.f32 %v1479, %v1479
      %v1481 = vsel %vm715, %v1480, 0.0
      %1482 = vadd.xlane.f32.xlu0 %v1481
      %v1483 = vpop.xlane.xlu0 %1482
      %v1484 = vmul.f32 %v1483, %v1295
      %v1485 = vadd.f32 %v1484, 1e-05
      %v1486 = vrsqrt.pop %v1485
      %v1487 = vmul.f32 %v1479, %v1486
      %v1488 = vld [vmem:[%s673] sm:$0x1]
      %v1490 = vlaneseq
      %v1491 = vshrl.u32 %v1490, 7
      %v1492 = vsub.s32 0, %v1491
      %v1493 = vrot.slane %v1488, %v1492
      %v1495 = vmul.f32 %v1487, %v1493
      %v1496 = vld [vmem:[%s676] sm:$0x1]
      %v1498 = vlaneseq
      %v1499 = vshrl.u32 %v1498, 7
      %v1500 = vsub.s32 0, %v1499
      %v1501 = vrot.slane %v1496, %v1500
      %v1503 = vadd.f32 %v1495, %v1501
      %1504 = vst.msk [vmem:[#allocation2] sm:$0xff] %vm715, %v1503
      %p1505 = scmp.eq.s32.totalorder %s30, 1
      // Predicated region
      $region81: #{encoder_forward.1} parent=75 // pred_check
        %p1506 = pneg %p1505
      $region82: #{encoder_forward.1} parent=75 // pred_check_branch
        %1508 = sbr.rel (%p1506) target = $region84
      $region83: #{encoder_forward.1} parent=75 // pred_region
        %1509 = vst.msk [vmem:[%s680] sm:$0xff] %vm715, %v1503
      $region84: #{encoder_forward.1} parent=75 // pred_fallthru
        _
      %p1510 = scmp.lt.s32.totalorder %s29, 1
      %s1511 = scalar_select %p1510, %s29, 1
      %s1512 = smul.addr %s1511, 8
      %s1513 = scalar_lea.vmem %s14, %s1512
      // Predicated region
      $region85: #{encoder_forward.1} parent=75 // pred_check
        %p1514 = pneg %p419
      $region86: #{encoder_forward.1} parent=75 // pred_check_branch
        %1516 = sbr.rel (%p1514) target = $region88
      $region87: #{encoder_forward.1} parent=75 // pred_region
        _
      $region88: #{encoder_forward.1} parent=75 // pred_fallthru
        _
    $region76: #{encoder_forward.1} parent=5 // pred_fallthru
      _
    %p1517 = scmp.le.s32.totalorder 2, %s20
    // Predicated region
    $region89: #{encoder_forward.1} parent=5 // pred_check
      %p1518 = pneg %p1517
    $region90: #{encoder_forward.1} parent=5 // pred_check_branch
      %1520 = sbr.rel (%p1518) target = $region92
    $region91: #{encoder_forward.1} parent=5 // pred_region
      %s1521 = ssub.s32 %s20, 2
      // Predicated region
      $region93: #{encoder_forward.1} parent=91 // pred_check
        %p1522 = pneg %p425
      $region94: #{encoder_forward.1} parent=91 // pred_check_branch
        %1524 = sbr.rel (%p1522) target = $region96
      $region95: #{encoder_forward.1} parent=91 // pred_region
        %p1525 = scmp.lt.s32.totalorder %s31, 1
        %s1526 = scalar_select %p1525, %s31, 1
        %s1527 = smul.addr %s1526, 8
        %s1528 = scalar_lea.vmem %s14, %s1527
      $region96: #{encoder_forward.1} parent=91 // pred_fallthru
        _
    $region92: #{encoder_forward.1} parent=5 // pred_fallthru
      _
  $region6: #{encoder_forward.1} parent=0 // loop_footer
    %s24 = sadd.s32 1, %s20
  $region7: #{encoder_forward.1} parent=0 // loop_footer_branch
    %19 = sbr.rel target = $region3
  $region8: #{encoder_forward.1} parent=0 // loop_exit
    _

</llo_original>
